<compile_context>
chip_gen: v7x
topology: tpu7x:2x2x1
jax: 0.10.0
libtpu: 0.0.40
codegen_flags: <defaults>
</compile_context>

<pallas_src>
import functools

import jax
import jax.numpy as jnp
from jax import lax
from jax.experimental import pallas as pl
from jax.experimental.pallas import tpu as pltpu


def _round_up(x, m):
    return ((x + m - 1) // m) * m


def rnn_model_kernel(tok_ref, h0_ref, wih_ref, whh_ref, bias_ref,
                     wout_ref, bout_ref, out_ref, hN_ref,
                     slab_scr, *, unroll=8):
    """Fused RNN forward: embedding, tanh recurrence, decoder Linear.

    All shapes are padded (Hp, Vp multiples of 128; Bp multiple of 8):
      tok_ref  : (T*Bp, 1)  int32     time-major token ids (-1 on padded rows)
      h0_ref   : (Bp, Hp)   f32       initial hidden state
      wih_ref  : (Vp, Hp)   bf16      W_ih^T
      whh_ref  : (Hp, Hp)   bf16      W_hh^T
      bias_ref : (1, Hp)    f32       b_ih + b_hh (pre-summed)
      wout_ref : (Hp, Vp)   bf16      W_out^T
      bout_ref : (1, Vp)    f32       b_out
      out_ref  : (T*Bp, Vp) f32       logits slab
      hN_ref   : (Bp, Hp)   f32       final hidden state
      slab_scr : (T*Bp, Hp) f32       embedded inputs, overwritten with h_t
    """
    TB = tok_ref.shape[0]
    Bp, Hp = h0_ref.shape
    Vp = wih_ref.shape[0]
    T = TB // Bp

    # ---- Batched input projection (off the serial chain) -------------------
    # one_hot(tokens) @ W_ih^T + (b_ih + b_hh) for ALL time steps at once.
    # Padded rows (token id -1) get an all-zero one-hot row and a masked bias.
    tok = tok_ref[...]                                          # (T*Bp, 1)
    onehot = (lax.broadcasted_iota(jnp.int32, (TB, Vp), 1) == tok
              ).astype(jnp.bfloat16)                            # exact in bf16
    valid = (tok >= 0).astype(jnp.float32)                      # (T*Bp, 1)
    slab_scr[...] = (
        jnp.dot(onehot, wih_ref[...], preferred_element_type=jnp.float32)
        + valid * bias_ref[...])

    # ---- Serial tanh recurrence: only h @ W_hh^T stays on the chain ---------
    # Each slab row block is read (pre-activation) before being overwritten
    # with the hidden state it produces -> single scratch buffer.
    def step(t, h):
        off = pl.multiple_of(t * Bp, Bp)
        pre = slab_scr[pl.ds(off, Bp), :] + jnp.dot(
            h.astype(jnp.bfloat16), whh_ref[...],
            preferred_element_type=jnp.float32)
        h_new = jnp.tanh(pre)
        slab_scr[pl.ds(off, Bp), :] = h_new
        return h_new

    h_final = lax.fori_loop(0, T, step, h0_ref[...], unroll=unroll)
    hN_ref[...] = h_final

    # ---- Batched decoder Linear (off the serial chain) ----------------------
    out_ref[...] = (
        jnp.dot(slab_scr[...].astype(jnp.bfloat16), wout_ref[...],
                preferred_element_type=jnp.float32)
        + bout_ref[...])


def rnn_model_forward(inputs, state, params):
    """inputs: (B, T) int32, state: (1, B, H) f32. Returns (logits, state)."""
    wih_t, whh_t, bih, bhh, wout_t, bout = params
    B, T = inputs.shape
    V, H = wih_t.shape

    # Lane/sublane padding: 128-wide lane-dense tiles, B a multiple of 8.
    Bp = _round_up(B, 8)
    Hp = _round_up(H, 128)
    Vp = _round_up(V, 128)

    # bf16 MXU operands (weights); biases / state stay f32.
    wih_p = jnp.zeros((Vp, Hp), jnp.bfloat16).at[:V, :H].set(
        wih_t.astype(jnp.bfloat16))
    whh_p = jnp.zeros((Hp, Hp), jnp.bfloat16).at[:H, :H].set(
        whh_t.astype(jnp.bfloat16))
    wout_p = jnp.zeros((Hp, Vp), jnp.bfloat16).at[:H, :V].set(
        wout_t.astype(jnp.bfloat16))
    bias_p = jnp.zeros((1, Hp), jnp.float32).at[:, :H].set(bih + bhh)
    bout_p = jnp.zeros((1, Vp), jnp.float32).at[:, :V].set(bout)
    h0_p = jnp.zeros((Bp, Hp), jnp.float32).at[:B, :H].set(state[0])

    # Time-major token ids; padded batch rows marked -1 so they stay zero.
    tok_tm = jnp.full((T, Bp), -1, jnp.int32).at[:, :B].set(
        inputs.T.astype(jnp.int32)).reshape(T * Bp, 1)

    # Explicit scoped-VMEM budget derived from the padded buffers
    # (x2 for pipeline double-buffers, + scratch + slack), floored at 16 MiB.
    io_bytes = (tok_tm.size * 4 + h0_p.size * 4
                + wih_p.size * 2 + whh_p.size * 2 + wout_p.size * 2
                + bias_p.size * 4 + bout_p.size * 4
                + T * Bp * Vp * 4 + Bp * Hp * 4)
    scratch_bytes = T * Bp * Hp * 4
    vmem_limit = max(16 * 1024 * 1024,
                     2 * io_bytes + scratch_bytes + (1 << 20))

    unroll = max(1, min(T, 8))   # bounded unroll; full unroll only for tiny T

    grid_spec = pltpu.PrefetchScalarGridSpec(
        num_scalar_prefetch=0,
        grid=(1,),                                              # single invocation
        in_specs=[
            pl.BlockSpec((T * Bp, 1), lambda i: (0, 0)),        # token ids
            pl.BlockSpec((Bp, Hp), lambda i: (0, 0)),           # h0
            pl.BlockSpec((Vp, Hp), lambda i: (0, 0)),           # W_ih^T (bf16)
            pl.BlockSpec((Hp, Hp), lambda i: (0, 0)),           # W_hh^T (bf16)
            pl.BlockSpec((1, Hp), lambda i: (0, 0)),            # b_ih + b_hh
            pl.BlockSpec((Hp, Vp), lambda i: (0, 0)),           # W_out^T (bf16)
            pl.BlockSpec((1, Vp), lambda i: (0, 0)),            # b_out
        ],
        out_specs=[
            pl.BlockSpec((T * Bp, Vp), lambda i: (0, 0)),       # logits slab
            pl.BlockSpec((Bp, Hp), lambda i: (0, 0)),           # final state
        ],
        scratch_shapes=[
            pltpu.VMEM((T * Bp, Hp), jnp.float32),              # emb -> hidden slab
        ],
    )

    out_p, hN_p = pl.pallas_call(
        functools.partial(rnn_model_kernel, unroll=unroll),
        out_shape=(
            jax.ShapeDtypeStruct((T * Bp, Vp), jnp.float32),
            jax.ShapeDtypeStruct((Bp, Hp), jnp.float32),
        ),
        grid_spec=grid_spec,
        compiler_params=pltpu.CompilerParams(
            dimension_semantics=("arbitrary",),
            vmem_limit_bytes=int(vmem_limit)),
    )(tok_tm, h0_p, wih_p, whh_p, bias_p, wout_p, bout_p)

    # Strip padding; match PyTorch output layout: (T*B, V) and (1, B, H).
    logits = out_p.reshape(T, Bp, Vp)[:, :B, :V].reshape(T * B, V)
    h_final = hN_p[:B, :H][None]
    return logits, h_final


def init_params(key, vocab_size, num_hiddens):
    """Deterministic PyTorch-style uniform init; weights stored transposed."""
    ks = jax.random.split(key, 6)
    bound = 1.0 / jnp.sqrt(num_hiddens)
    wih_t = jax.random.uniform(ks[0], (vocab_size, num_hiddens),
                               jnp.float32, -bound, bound)
    whh_t = jax.random.uniform(ks[1], (num_hiddens, num_hiddens),
                               jnp.float32, -bound, bound)
    bih = jax.random.uniform(ks[2], (1, num_hiddens),
                             jnp.float32, -bound, bound)
    bhh = jax.random.uniform(ks[3], (1, num_hiddens),
                             jnp.float32, -bound, bound)
    wout_t = jax.random.uniform(ks[4], (num_hiddens, vocab_size),
                                jnp.float32, -bound, bound)
    bout = jax.random.uniform(ks[5], (1, vocab_size),
                              jnp.float32, -bound, bound)
    return (wih_t, whh_t, bih, bhh, wout_t, bout)


def rnn_model_reference(inputs, state, params):
    """Pure-JAX f32 reference for correctness checking."""
    wih_t, whh_t, bih, bhh, wout_t, bout = params
    V = wih_t.shape[0]
    x = jax.nn.one_hot(inputs.T, V, dtype=jnp.float32)   # (T, B, V)

    def step(h, x_t):
        h_new = jnp.tanh(x_t @ wih_t + bih + h @ whh_t + bhh)
        return h_new, h_new

    h_final, ys = jax.lax.scan(step, state[0], x)
    logits = ys.reshape(-1, ys.shape[-1]) @ wout_t + bout
    return logits, h_final[None]


if __name__ == "__main__":
    # Small shapes consistent with the module (d2l-style char vocab, H=256).
    batch_size = 8
    num_steps = 8
    vocab_size = 28      # exercises lane padding 28 -> 128
    num_hiddens = 256    # matches the module's num_hiddens

    key = jax.random.PRNGKey(0)
    k_in, k_par = jax.random.split(key)

    inputs = jax.random.randint(k_in, (batch_size, num_steps), 0, vocab_size,
                                dtype=jnp.int32)
    state = jnp.zeros((1, batch_size, num_hiddens), dtype=jnp.float32)
    params = init_params(k_par, vocab_size, num_hiddens)

    logits, new_state = rnn_model_forward(inputs, state, params)
    logits = jax.block_until_ready(logits)
    new_state = jax.block_until_ready(new_state)

    # Sanity check against the f32 pure-JAX reference (bf16 weights in the
    # kernel -> slightly looser tolerances than pure f32).
    ref_logits, ref_state = rnn_model_reference(inputs, state, params)
    assert logits.shape == (num_steps * batch_size, vocab_size)
    assert new_state.shape == (1, batch_size, num_hiddens)
    assert jnp.allclose(logits, ref_logits, atol=2e-2, rtol=2e-2)
    assert jnp.allclose(new_state, ref_state, atol=2e-2, rtol=2e-2)

    print("KERNEL_OK")
</pallas_src>

<mosaic_0001>
module attributes {stable_mosaic.version = 11 : i64} {
  func.func @rnn_model_kernel(%arg0: i32, %arg1: memref<64x1xi32, #tpu.memory_space<vmem>>, %arg2: memref<8x256xf32, #tpu.memory_space<vmem>>, %arg3: memref<128x256xbf16, #tpu.memory_space<vmem>>, %arg4: memref<256x256xbf16, #tpu.memory_space<vmem>>, %arg5: memref<1x256xf32, #tpu.memory_space<vmem>>, %arg6: memref<256x128xbf16, #tpu.memory_space<vmem>>, %arg7: memref<1x128xf32, #tpu.memory_space<vmem>>, %arg8: memref<64x128xf32, #tpu.memory_space<vmem>>, %arg9: memref<8x256xf32, #tpu.memory_space<vmem>>, %arg10: memref<64x256xf32, #tpu.memory_space<vmem>>) attributes {dimension_semantics = [#tpu.dimension_semantics<arbitrary>], iteration_bounds = array<i64: 1>, scalar_prefetch = 0 : i64, scratch_operands = 1 : i64, tpu.core_type = #tpu.core_type<tc>, window_params = [{pipeline_mode = #tpu.pipeline_mode<synchronous>, transform_indices = @transform_0, window_bounds = array<i64: 64, 1>}, {pipeline_mode = #tpu.pipeline_mode<synchronous>, transform_indices = @transform_1, window_bounds = array<i64: 8, 256>}, {pipeline_mode = #tpu.pipeline_mode<synchronous>, transform_indices = @transform_2, window_bounds = array<i64: 128, 256>}, {pipeline_mode = #tpu.pipeline_mode<synchronous>, transform_indices = @transform_3, window_bounds = array<i64: 256, 256>}, {pipeline_mode = #tpu.pipeline_mode<synchronous>, transform_indices = @transform_4, window_bounds = array<i64: 1, 256>}, {pipeline_mode = #tpu.pipeline_mode<synchronous>, transform_indices = @transform_5, window_bounds = array<i64: 256, 128>}, {pipeline_mode = #tpu.pipeline_mode<synchronous>, transform_indices = @transform_6, window_bounds = array<i64: 1, 128>}, {pipeline_mode = #tpu.pipeline_mode<synchronous>, transform_indices = @transform_7, window_bounds = array<i64: 64, 128>}, {pipeline_mode = #tpu.pipeline_mode<synchronous>, transform_indices = @transform_8, window_bounds = array<i64: 8, 256>}]} {
    %c0 = arith.constant 0 : index
    %c0_0 = arith.constant 0 : index
    %0 = vector.load %arg1[%c0, %c0_0] : memref<64x1xi32, #tpu.memory_space<vmem>>, vector<64x1xi32>
    %1 = tpu.iota {dimensions = array<i32: 1>} : vector<64x128xi32>
    %2 = vector.broadcast %0 : vector<64x1xi32> to vector<64x128xi32>
    %3 = arith.cmpi eq, %1, %2 : vector<64x128xi32>
    %4 = arith.extui %3 : vector<64x128xi1> to vector<64x128xi32>
    %5 = arith.sitofp %4 : vector<64x128xi32> to vector<64x128xf32>
    %6 = arith.truncf %5 : vector<64x128xf32> to vector<64x128xbf16>
    %c0_i32 = arith.constant 0 : i32
    %7 = vector.broadcast %c0_i32 : i32 to vector<64x1xi32>
    %8 = arith.cmpi sge, %0, %7 : vector<64x1xi32>
    %9 = arith.extui %8 : vector<64x1xi1> to vector<64x1xi32>
    %10 = arith.sitofp %9 : vector<64x1xi32> to vector<64x1xf32>
    %c0_1 = arith.constant 0 : index
    %c0_2 = arith.constant 0 : index
    %11 = vector.load %arg3[%c0_1, %c0_2] : memref<128x256xbf16, #tpu.memory_space<vmem>>, vector<128x256xbf16>
    %cst = arith.constant dense<0.000000e+00> : vector<64x256xf32>
    %12 = tpu.matmul %6, %11, %cst {dimension_numbers = #tpu.dot_dimension_numbers<[1], [0], [0], [1], [0, 0, 1, 1], [], []>} : vector<64x128xbf16>, vector<128x256xbf16>, vector<64x256xf32> -> vector<64x256xf32>
    %c0_3 = arith.constant 0 : index
    %c0_4 = arith.constant 0 : index
    %13 = vector.load %arg5[%c0_3, %c0_4] : memref<1x256xf32, #tpu.memory_space<vmem>>, vector<1x256xf32>
    %14 = vector.broadcast %10 : vector<64x1xf32> to vector<64x256xf32>
    %15 = vector.broadcast %13 : vector<1x256xf32> to vector<64x256xf32>
    %16 = arith.mulf %14, %15 : vector<64x256xf32>
    %17 = arith.addf %12, %16 : vector<64x256xf32>
    %c0_5 = arith.constant 0 : index
    %c0_6 = arith.constant 0 : index
    %18 = vector.load %arg10[%c0_5, %c0_6] : memref<64x256xf32, #tpu.memory_space<vmem>>, vector<64x256xf32>
    tpu.vector_store %arg10[%c0_5, %c0_6], %17 {strides = array<i32>} : memref<64x256xf32, #tpu.memory_space<vmem>>, vector<64x256xf32>,
    %c0_7 = arith.constant 0 : index
    %c0_8 = arith.constant 0 : index
    %19 = vector.load %arg2[%c0_7, %c0_8] : memref<8x256xf32, #tpu.memory_space<vmem>>, vector<8x256xf32>
    %c0_i32_9 = arith.constant 0 : i32
    %c8_i32 = arith.constant 8 : i32
    %20 = arith.muli %c0_i32_9, %c8_i32 : i32
    %21 = tpu.assume_multiple %20, 8 : i32
    %22 = arith.index_cast %21 : i32 to index
    %c0_10 = arith.constant 0 : index
    %23 = vector.load %arg10[%22, %c0_10] : memref<64x256xf32, #tpu.memory_space<vmem>>, vector<8x256xf32>
    %24 = arith.truncf %19 : vector<8x256xf32> to vector<8x256xbf16>
    %c0_11 = arith.constant 0 : index
    %c0_12 = arith.constant 0 : index
    %25 = vector.load %arg4[%c0_11, %c0_12] : memref<256x256xbf16, #tpu.memory_space<vmem>>, vector<256x256xbf16>
    %cst_13 = arith.constant dense<0.000000e+00> : vector<8x256xf32>
    %26 = tpu.matmul %24, %25, %cst_13 {dimension_numbers = #tpu.dot_dimension_numbers<[1], [0], [0], [1], [0, 0, 1, 1], [], []>} : vector<8x256xbf16>, vector<256x256xbf16>, vector<8x256xf32> -> vector<8x256xf32>
    %27 = arith.addf %23, %26 : vector<8x256xf32>
    %28 = math.tanh %27 : vector<8x256xf32>
    %29 = arith.index_cast %21 : i32 to index
    %c0_14 = arith.constant 0 : index
    %30 = vector.load %arg10[%29, %c0_14] : memref<64x256xf32, #tpu.memory_space<vmem>>, vector<8x256xf32>
    tpu.vector_store %arg10[%29, %c0_14], %28 {strides = array<i32>} : memref<64x256xf32, #tpu.memory_space<vmem>>, vector<8x256xf32>,
    %c1_i32 = arith.constant 1 : i32
    %c8_i32_15 = arith.constant 8 : i32
    %31 = arith.muli %c1_i32, %c8_i32_15 : i32
    %32 = tpu.assume_multiple %31, 8 : i32
    %33 = arith.index_cast %32 : i32 to index
    %c0_16 = arith.constant 0 : index
    %34 = vector.load %arg10[%33, %c0_16] : memref<64x256xf32, #tpu.memory_space<vmem>>, vector<8x256xf32>
    %35 = arith.truncf %28 : vector<8x256xf32> to vector<8x256xbf16>
    %c0_17 = arith.constant 0 : index
    %c0_18 = arith.constant 0 : index
    %36 = vector.load %arg4[%c0_17, %c0_18] : memref<256x256xbf16, #tpu.memory_space<vmem>>, vector<256x256xbf16>
    %cst_19 = arith.constant dense<0.000000e+00> : vector<8x256xf32>
    %37 = tpu.matmul %35, %36, %cst_19 {dimension_numbers = #tpu.dot_dimension_numbers<[1], [0], [0], [1], [0, 0, 1, 1], [], []>} : vector<8x256xbf16>, vector<256x256xbf16>, vector<8x256xf32> -> vector<8x256xf32>
    %38 = arith.addf %34, %37 : vector<8x256xf32>
    %39 = math.tanh %38 : vector<8x256xf32>
    %40 = arith.index_cast %32 : i32 to index
    %c0_20 = arith.constant 0 : index
    %41 = vector.load %arg10[%40, %c0_20] : memref<64x256xf32, #tpu.memory_space<vmem>>, vector<8x256xf32>
    tpu.vector_store %arg10[%40, %c0_20], %39 {strides = array<i32>} : memref<64x256xf32, #tpu.memory_space<vmem>>, vector<8x256xf32>,
    %c2_i32 = arith.constant 2 : i32
    %c8_i32_21 = arith.constant 8 : i32
    %42 = arith.muli %c2_i32, %c8_i32_21 : i32
    %43 = tpu.assume_multiple %42, 8 : i32
    %44 = arith.index_cast %43 : i32 to index
    %c0_22 = arith.constant 0 : index
    %45 = vector.load %arg10[%44, %c0_22] : memref<64x256xf32, #tpu.memory_space<vmem>>, vector<8x256xf32>
    %46 = arith.truncf %39 : vector<8x256xf32> to vector<8x256xbf16>
    %c0_23 = arith.constant 0 : index
    %c0_24 = arith.constant 0 : index
    %47 = vector.load %arg4[%c0_23, %c0_24] : memref<256x256xbf16, #tpu.memory_space<vmem>>, vector<256x256xbf16>
    %cst_25 = arith.constant dense<0.000000e+00> : vector<8x256xf32>
    %48 = tpu.matmul %46, %47, %cst_25 {dimension_numbers = #tpu.dot_dimension_numbers<[1], [0], [0], [1], [0, 0, 1, 1], [], []>} : vector<8x256xbf16>, vector<256x256xbf16>, vector<8x256xf32> -> vector<8x256xf32>
    %49 = arith.addf %45, %48 : vector<8x256xf32>
    %50 = math.tanh %49 : vector<8x256xf32>
    %51 = arith.index_cast %43 : i32 to index
    %c0_26 = arith.constant 0 : index
    %52 = vector.load %arg10[%51, %c0_26] : memref<64x256xf32, #tpu.memory_space<vmem>>, vector<8x256xf32>
    tpu.vector_store %arg10[%51, %c0_26], %50 {strides = array<i32>} : memref<64x256xf32, #tpu.memory_space<vmem>>, vector<8x256xf32>,
    %c3_i32 = arith.constant 3 : i32
    %c8_i32_27 = arith.constant 8 : i32
    %53 = arith.muli %c3_i32, %c8_i32_27 : i32
    %54 = tpu.assume_multiple %53, 8 : i32
    %55 = arith.index_cast %54 : i32 to index
    %c0_28 = arith.constant 0 : index
    %56 = vector.load %arg10[%55, %c0_28] : memref<64x256xf32, #tpu.memory_space<vmem>>, vector<8x256xf32>
    %57 = arith.truncf %50 : vector<8x256xf32> to vector<8x256xbf16>
    %c0_29 = arith.constant 0 : index
    %c0_30 = arith.constant 0 : index
    %58 = vector.load %arg4[%c0_29, %c0_30] : memref<256x256xbf16, #tpu.memory_space<vmem>>, vector<256x256xbf16>
    %cst_31 = arith.constant dense<0.000000e+00> : vector<8x256xf32>
    %59 = tpu.matmul %57, %58, %cst_31 {dimension_numbers = #tpu.dot_dimension_numbers<[1], [0], [0], [1], [0, 0, 1, 1], [], []>} : vector<8x256xbf16>, vector<256x256xbf16>, vector<8x256xf32> -> vector<8x256xf32>
    %60 = arith.addf %56, %59 : vector<8x256xf32>
    %61 = math.tanh %60 : vector<8x256xf32>
    %62 = arith.index_cast %54 : i32 to index
    %c0_32 = arith.constant 0 : index
    %63 = vector.load %arg10[%62, %c0_32] : memref<64x256xf32, #tpu.memory_space<vmem>>, vector<8x256xf32>
    tpu.vector_store %arg10[%62, %c0_32], %61 {strides = array<i32>} : memref<64x256xf32, #tpu.memory_space<vmem>>, vector<8x256xf32>,
    %c4_i32 = arith.constant 4 : i32
    %c8_i32_33 = arith.constant 8 : i32
    %64 = arith.muli %c4_i32, %c8_i32_33 : i32
    %65 = tpu.assume_multiple %64, 8 : i32
    %66 = arith.index_cast %65 : i32 to index
    %c0_34 = arith.constant 0 : index
    %67 = vector.load %arg10[%66, %c0_34] : memref<64x256xf32, #tpu.memory_space<vmem>>, vector<8x256xf32>
    %68 = arith.truncf %61 : vector<8x256xf32> to vector<8x256xbf16>
    %c0_35 = arith.constant 0 : index
    %c0_36 = arith.constant 0 : index
    %69 = vector.load %arg4[%c0_35, %c0_36] : memref<256x256xbf16, #tpu.memory_space<vmem>>, vector<256x256xbf16>
    %cst_37 = arith.constant dense<0.000000e+00> : vector<8x256xf32>
    %70 = tpu.matmul %68, %69, %cst_37 {dimension_numbers = #tpu.dot_dimension_numbers<[1], [0], [0], [1], [0, 0, 1, 1], [], []>} : vector<8x256xbf16>, vector<256x256xbf16>, vector<8x256xf32> -> vector<8x256xf32>
    %71 = arith.addf %67, %70 : vector<8x256xf32>
    %72 = math.tanh %71 : vector<8x256xf32>
    %73 = arith.index_cast %65 : i32 to index
    %c0_38 = arith.constant 0 : index
    %74 = vector.load %arg10[%73, %c0_38] : memref<64x256xf32, #tpu.memory_space<vmem>>, vector<8x256xf32>
    tpu.vector_store %arg10[%73, %c0_38], %72 {strides = array<i32>} : memref<64x256xf32, #tpu.memory_space<vmem>>, vector<8x256xf32>,
    %c5_i32 = arith.constant 5 : i32
    %c8_i32_39 = arith.constant 8 : i32
    %75 = arith.muli %c5_i32, %c8_i32_39 : i32
    %76 = tpu.assume_multiple %75, 8 : i32
    %77 = arith.index_cast %76 : i32 to index
    %c0_40 = arith.constant 0 : index
    %78 = vector.load %arg10[%77, %c0_40] : memref<64x256xf32, #tpu.memory_space<vmem>>, vector<8x256xf32>
    %79 = arith.truncf %72 : vector<8x256xf32> to vector<8x256xbf16>
    %c0_41 = arith.constant 0 : index
    %c0_42 = arith.constant 0 : index
    %80 = vector.load %arg4[%c0_41, %c0_42] : memref<256x256xbf16, #tpu.memory_space<vmem>>, vector<256x256xbf16>
    %cst_43 = arith.constant dense<0.000000e+00> : vector<8x256xf32>
    %81 = tpu.matmul %79, %80, %cst_43 {dimension_numbers = #tpu.dot_dimension_numbers<[1], [0], [0], [1], [0, 0, 1, 1], [], []>} : vector<8x256xbf16>, vector<256x256xbf16>, vector<8x256xf32> -> vector<8x256xf32>
    %82 = arith.addf %78, %81 : vector<8x256xf32>
    %83 = math.tanh %82 : vector<8x256xf32>
    %84 = arith.index_cast %76 : i32 to index
    %c0_44 = arith.constant 0 : index
    %85 = vector.load %arg10[%84, %c0_44] : memref<64x256xf32, #tpu.memory_space<vmem>>, vector<8x256xf32>
    tpu.vector_store %arg10[%84, %c0_44], %83 {strides = array<i32>} : memref<64x256xf32, #tpu.memory_space<vmem>>, vector<8x256xf32>,
    %c6_i32 = arith.constant 6 : i32
    %c8_i32_45 = arith.constant 8 : i32
    %86 = arith.muli %c6_i32, %c8_i32_45 : i32
    %87 = tpu.assume_multiple %86, 8 : i32
    %88 = arith.index_cast %87 : i32 to index
    %c0_46 = arith.constant 0 : index
    %89 = vector.load %arg10[%88, %c0_46] : memref<64x256xf32, #tpu.memory_space<vmem>>, vector<8x256xf32>
    %90 = arith.truncf %83 : vector<8x256xf32> to vector<8x256xbf16>
    %c0_47 = arith.constant 0 : index
    %c0_48 = arith.constant 0 : index
    %91 = vector.load %arg4[%c0_47, %c0_48] : memref<256x256xbf16, #tpu.memory_space<vmem>>, vector<256x256xbf16>
    %cst_49 = arith.constant dense<0.000000e+00> : vector<8x256xf32>
    %92 = tpu.matmul %90, %91, %cst_49 {dimension_numbers = #tpu.dot_dimension_numbers<[1], [0], [0], [1], [0, 0, 1, 1], [], []>} : vector<8x256xbf16>, vector<256x256xbf16>, vector<8x256xf32> -> vector<8x256xf32>
    %93 = arith.addf %89, %92 : vector<8x256xf32>
    %94 = math.tanh %93 : vector<8x256xf32>
    %95 = arith.index_cast %87 : i32 to index
    %c0_50 = arith.constant 0 : index
    %96 = vector.load %arg10[%95, %c0_50] : memref<64x256xf32, #tpu.memory_space<vmem>>, vector<8x256xf32>
    tpu.vector_store %arg10[%95, %c0_50], %94 {strides = array<i32>} : memref<64x256xf32, #tpu.memory_space<vmem>>, vector<8x256xf32>,
    %c7_i32 = arith.constant 7 : i32
    %c8_i32_51 = arith.constant 8 : i32
    %97 = arith.muli %c7_i32, %c8_i32_51 : i32
    %98 = tpu.assume_multiple %97, 8 : i32
    %99 = arith.index_cast %98 : i32 to index
    %c0_52 = arith.constant 0 : index
    %100 = vector.load %arg10[%99, %c0_52] : memref<64x256xf32, #tpu.memory_space<vmem>>, vector<8x256xf32>
    %101 = arith.truncf %94 : vector<8x256xf32> to vector<8x256xbf16>
    %c0_53 = arith.constant 0 : index
    %c0_54 = arith.constant 0 : index
    %102 = vector.load %arg4[%c0_53, %c0_54] : memref<256x256xbf16, #tpu.memory_space<vmem>>, vector<256x256xbf16>
    %cst_55 = arith.constant dense<0.000000e+00> : vector<8x256xf32>
    %103 = tpu.matmul %101, %102, %cst_55 {dimension_numbers = #tpu.dot_dimension_numbers<[1], [0], [0], [1], [0, 0, 1, 1], [], []>} : vector<8x256xbf16>, vector<256x256xbf16>, vector<8x256xf32> -> vector<8x256xf32>
    %104 = arith.addf %100, %103 : vector<8x256xf32>
    %105 = math.tanh %104 : vector<8x256xf32>
    %106 = arith.index_cast %98 : i32 to index
    %c0_56 = arith.constant 0 : index
    %107 = vector.load %arg10[%106, %c0_56] : memref<64x256xf32, #tpu.memory_space<vmem>>, vector<8x256xf32>
    tpu.vector_store %arg10[%106, %c0_56], %105 {strides = array<i32>} : memref<64x256xf32, #tpu.memory_space<vmem>>, vector<8x256xf32>,
    %c8_i32_57 = arith.constant 8 : i32
    %c0_58 = arith.constant 0 : index
    %c0_59 = arith.constant 0 : index
    %108 = vector.load %arg9[%c0_58, %c0_59] : memref<8x256xf32, #tpu.memory_space<vmem>>, vector<8x256xf32>
    tpu.vector_store %arg9[%c0_58, %c0_59], %105 {strides = array<i32>} : memref<8x256xf32, #tpu.memory_space<vmem>>, vector<8x256xf32>,
    %c0_60 = arith.constant 0 : index
    %c0_61 = arith.constant 0 : index
    %109 = vector.load %arg10[%c0_60, %c0_61] : memref<64x256xf32, #tpu.memory_space<vmem>>, vector<64x256xf32>
    %110 = arith.truncf %109 : vector<64x256xf32> to vector<64x256xbf16>
    %c0_62 = arith.constant 0 : index
    %c0_63 = arith.constant 0 : index
    %111 = vector.load %arg6[%c0_62, %c0_63] : memref<256x128xbf16, #tpu.memory_space<vmem>>, vector<256x128xbf16>
    %cst_64 = arith.constant dense<0.000000e+00> : vector<64x128xf32>
    %112 = tpu.matmul %110, %111, %cst_64 {dimension_numbers = #tpu.dot_dimension_numbers<[1], [0], [0], [1], [0, 0, 1, 1], [], []>} : vector<64x256xbf16>, vector<256x128xbf16>, vector<64x128xf32> -> vector<64x128xf32>
    %c0_65 = arith.constant 0 : index
    %c0_66 = arith.constant 0 : index
    %113 = vector.load %arg7[%c0_65, %c0_66] : memref<1x128xf32, #tpu.memory_space<vmem>>, vector<1x128xf32>
    %114 = vector.broadcast %113 : vector<1x128xf32> to vector<64x128xf32>
    %115 = arith.addf %112, %114 : vector<64x128xf32>
    %c0_67 = arith.constant 0 : index
    %c0_68 = arith.constant 0 : index
    %116 = vector.load %arg8[%c0_67, %c0_68] : memref<64x128xf32, #tpu.memory_space<vmem>>, vector<64x128xf32>
    tpu.vector_store %arg8[%c0_67, %c0_68], %115 {strides = array<i32>} : memref<64x128xf32, #tpu.memory_space<vmem>>, vector<64x128xf32>,
    return
  }
  func.func @transform_0(%arg0: i32) -> (i32, i32) {
    %c0_i32 = arith.constant 0 : i32
    %c0_i32_0 = arith.constant 0 : i32
    %c0_i32_1 = arith.constant 0 : i32
    return %c0_i32, %c0_i32_0 : i32, i32
  }
  func.func @transform_1(%arg0: i32) -> (i32, i32) {
    %c0_i32 = arith.constant 0 : i32
    %c0_i32_0 = arith.constant 0 : i32
    %c0_i32_1 = arith.constant 0 : i32
    return %c0_i32, %c0_i32_0 : i32, i32
  }
  func.func @transform_2(%arg0: i32) -> (i32, i32) {
    %c0_i32 = arith.constant 0 : i32
    %c0_i32_0 = arith.constant 0 : i32
    %c0_i32_1 = arith.constant 0 : i32
    return %c0_i32, %c0_i32_0 : i32, i32
  }
  func.func @transform_3(%arg0: i32) -> (i32, i32) {
    %c0_i32 = arith.constant 0 : i32
    %c0_i32_0 = arith.constant 0 : i32
    %c0_i32_1 = arith.constant 0 : i32
    return %c0_i32, %c0_i32_0 : i32, i32
  }
  func.func @transform_4(%arg0: i32) -> (i32, i32) {
    %c0_i32 = arith.constant 0 : i32
    %c0_i32_0 = arith.constant 0 : i32
    %c0_i32_1 = arith.constant 0 : i32
    return %c0_i32, %c0_i32_0 : i32, i32
  }
  func.func @transform_5(%arg0: i32) -> (i32, i32) {
    %c0_i32 = arith.constant 0 : i32
    %c0_i32_0 = arith.constant 0 : i32
    %c0_i32_1 = arith.constant 0 : i32
    return %c0_i32, %c0_i32_0 : i32, i32
  }
  func.func @transform_6(%arg0: i32) -> (i32, i32) {
    %c0_i32 = arith.constant 0 : i32
    %c0_i32_0 = arith.constant 0 : i32
    %c0_i32_1 = arith.constant 0 : i32
    return %c0_i32, %c0_i32_0 : i32, i32
  }
  func.func @transform_7(%arg0: i32) -> (i32, i32) {
    %c0_i32 = arith.constant 0 : i32
    %c0_i32_0 = arith.constant 0 : i32
    %c0_i32_1 = arith.constant 0 : i32
    return %c0_i32, %c0_i32_0 : i32, i32
  }
  func.func @transform_8(%arg0: i32) -> (i32, i32) {
    %c0_i32 = arith.constant 0 : i32
    %c0_i32_0 = arith.constant 0 : i32
    %c0_i32_1 = arith.constant 0 : i32
    return %c0_i32, %c0_i32_0 : i32, i32
  }
}

</mosaic_0001>

<llo_original>
// kernel: tpu_custom_call.1
$region0: #{tpu_custom_call.1}
  #allocation0 [shape = 'u32[]', space=smem, size = 0x4, offset = 0x4, fixed_abs, tag = 'smem constant byte address 0x4 - core index']
  #allocation1 [shape = 'u32[144,128]{1,0:T(1,128)}', space=vmem, size = 0x12000, scoped, tag = 'internal scratch']
  #allocation2 [shape = 'f32[64,256]{1,0:T(8,128)}', space=vmem, size = 0x10000, scoped, tag = 'scratch operand']
  %s0 = inlined_call_operand.vmem [shape: s32[64,1], index: 0, kind: input, shape index: {}]
  %s1 = inlined_call_operand.vmem [shape: f32[8,256], index: 1, kind: input, shape index: {}]
  %s2 = inlined_call_operand.hbm [shape: bf16[128,256], index: 2, kind: input, shape index: {}]
  %s3 = inlined_call_operand.hbm [shape: bf16[256,256], index: 3, kind: input, shape index: {}]
  %s4 = inlined_call_operand.vmem [shape: f32[1,256], index: 4, kind: input, shape index: {}]
  %s5 = inlined_call_operand.hbm [shape: bf16[256,128], index: 5, kind: input, shape index: {}]
  %s6 = inlined_call_operand.vmem [shape: f32[1,128], index: 6, kind: input, shape index: {}]
  %s7 = inlined_call_operand.hbm [shape: f32[64,128], index: 7, kind: output, shape index: {0}]
  %s8 = inlined_call_operand.hbm [shape: f32[8,256], index: 8, kind: output, shape index: {1}]
  %9 = xla_tuple %s7, %s8
  %s10 = sld [smem:[#allocation0]]
  $region58: #{tpu_custom_call.1} parent=0
    _
  %s12 = ssub.s32 1, %s10
  %s13 = scalar_select 0, %s12, %s10
  $region1: #{tpu_custom_call.1} parent=0
    #allocation3 [shape = 'u8[65536]{0}', space=vmem, size = 0x10000, scoped, tag = 'input window, operand 2, single buffered']
    #allocation4 [shape = 's32[1]{0}', space=sflag, size = 0x4, scoped, tag = 'scoped memory for tpu_custom_call.1']
    #allocation5 [shape = 's32[1]{0}', space=sflag, size = 0x4, scoped, tag = 'scoped memory for tpu_custom_call.1']
    #allocation6 [shape = 'u8[131072]{0}', space=vmem, size = 0x20000, scoped, tag = 'input window, operand 3, single buffered']
    #allocation7 [shape = 's32[1]{0}', space=sflag, size = 0x4, scoped, tag = 'scoped memory for tpu_custom_call.1']
    #allocation8 [shape = 'u8[65536]{0}', space=vmem, size = 0x10000, scoped, tag = 'input window, operand 5, single buffered']
    #allocation9 [shape = 'u8[32768]{0}', space=vmem, size = 0x8000, scoped, tag = 'output window, operand 0, single buffered']
    #allocation10 [shape = 'u8[8192]{0}', space=vmem, size = 0x2000, scoped, tag = 'output window, operand 1, single buffered']
    #allocation11 [shape = 's32[1]{0}', space=sflag, size = 0x4, scoped, tag = 'scoped memory for tpu_custom_call.1']
    %14 = vsyncpa [#allocation4], 0
    %15 = vsyncpa [#allocation7], 0
    %16 = vsyncpa [#allocation5], 0
    %17 = vsyncpa [#allocation11], 0
    // Predicated region
    $region2: #{tpu_custom_call.1} parent=1 // pred_check
      _
    $region3: #{tpu_custom_call.1} parent=1 // pred_check_branch
      %19 = sbr.rel (0) target = $region5
    $region4: #{tpu_custom_call.1} parent=1 // pred_region
      _
    $region5: #{tpu_custom_call.1} parent=1 // pred_fallthru
      _
    // Predicated region
    $region6: #{tpu_custom_call.1} parent=1 // pred_check
      _
    $region7: #{tpu_custom_call.1} parent=1 // pred_check_branch
      %21 = sbr.rel (0) target = $region9
    $region8: #{tpu_custom_call.1} parent=1 // pred_region
      _
    $region9: #{tpu_custom_call.1} parent=1 // pred_fallthru
      _
    // Predicated region
    $region10: #{tpu_custom_call.1} parent=1 // pred_check
      _
    $region11: #{tpu_custom_call.1} parent=1 // pred_check_branch
      %23 = sbr.rel (0) target = $region13
    $region12: #{tpu_custom_call.1} parent=1 // pred_region
      %s25 = ssub.s32 2048, 2048
      %26 = vsyncadd [#allocation4], %s25
      %s27 = sshll.u32 [#allocation3], 4
      %s28 = int_to_ptr.vmem [resolvable:$true] %s27
      %33 = dma.hbm_to_vmem [thread:$0]  %s2, 2048, %s28, [#allocation4], 128, 128, 8
    $region13: #{tpu_custom_call.1} parent=1 // pred_fallthru
      _
    // Predicated region
    $region14: #{tpu_custom_call.1} parent=1 // pred_check
      _
    $region15: #{tpu_custom_call.1} parent=1 // pred_check_branch
      %35 = sbr.rel (0) target = $region17
    $region16: #{tpu_custom_call.1} parent=1 // pred_region
      %s37 = ssub.s32 4096, 4096
      %38 = vsyncadd [#allocation7], %s37
      %s39 = sshll.u32 [#allocation6], 4
      %s40 = int_to_ptr.vmem [resolvable:$true] %s39
      %45 = dma.hbm_to_vmem [thread:$0]  %s3, 4096, %s40, [#allocation7], 128, 128, 8
    $region17: #{tpu_custom_call.1} parent=1 // pred_fallthru
      _
    // Predicated region
    $region18: #{tpu_custom_call.1} parent=1 // pred_check
      _
    $region19: #{tpu_custom_call.1} parent=1 // pred_check_branch
      %47 = sbr.rel (0) target = $region21
    $region20: #{tpu_custom_call.1} parent=1 // pred_region
      _
    $region21: #{tpu_custom_call.1} parent=1 // pred_fallthru
      _
    // Predicated region
    $region22: #{tpu_custom_call.1} parent=1 // pred_check
      _
    $region23: #{tpu_custom_call.1} parent=1 // pred_check_branch
      %49 = sbr.rel (0) target = $region25
    $region24: #{tpu_custom_call.1} parent=1 // pred_region
      %s51 = ssub.s32 2048, 2048
      %52 = vsyncadd [#allocation7], %s51
      %s53 = sshll.u32 [#allocation8], 4
      %s54 = int_to_ptr.vmem [resolvable:$true] %s53
      %59 = dma.hbm_to_vmem [thread:$0]  %s5, 2048, %s54, [#allocation7], 64, 64, 4
    $region25: #{tpu_custom_call.1} parent=1 // pred_fallthru
      _
    // Predicated region
    $region26: #{tpu_custom_call.1} parent=1 // pred_check
      _
    $region27: #{tpu_custom_call.1} parent=1 // pred_check_branch
      %61 = sbr.rel (0) target = $region29
    $region28: #{tpu_custom_call.1} parent=1 // pred_region
      _
    $region29: #{tpu_custom_call.1} parent=1 // pred_fallthru
      _
    // Predicated region
    $region30: #{tpu_custom_call.1} parent=1 // pred_check
      _
    $region31: #{tpu_custom_call.1} parent=1 // pred_check_branch
      %63 = sbr.rel (0) target = $region33
    $region32: #{tpu_custom_call.1} parent=1 // pred_region
      %64 = dma.done [#allocation4], 2048
    $region33: #{tpu_custom_call.1} parent=1 // pred_fallthru
      _
    // Predicated region
    $region34: #{tpu_custom_call.1} parent=1 // pred_check
      _
    $region35: #{tpu_custom_call.1} parent=1 // pred_check_branch
      %66 = sbr.rel (0) target = $region37
    $region36: #{tpu_custom_call.1} parent=1 // pred_region
      %67 = dma.done [#allocation7], 4096
    $region37: #{tpu_custom_call.1} parent=1 // pred_fallthru
      _
    // Predicated region
    $region38: #{tpu_custom_call.1} parent=1 // pred_check
      _
    $region39: #{tpu_custom_call.1} parent=1 // pred_check_branch
      %69 = sbr.rel (0) target = $region41
    $region40: #{tpu_custom_call.1} parent=1 // pred_region
      %70 = dma.done [#allocation7], 2048
    $region41: #{tpu_custom_call.1} parent=1 // pred_fallthru
      _
    %v72 = vld [vmem:[%s0] sm:$0xff]
    %v73 = vld [vmem:[%s0 + $0x8] sm:$0xff]
    %v74 = vld [vmem:[%s0 + $0x10] sm:$0xff]
    %v75 = vld [vmem:[%s0 + $0x18] sm:$0xff]
    %v76 = vld [vmem:[%s0 + $0x20] sm:$0xff]
    %v77 = vld [vmem:[%s0 + $0x28] sm:$0xff]
    %v78 = vld [vmem:[%s0 + $0x30] sm:$0xff]
    %v79 = vld [vmem:[%s0 + $0x38] sm:$0xff]
    %v80 = vlaneseq
    %v81 = vand.u32 %v80, 127
    %82 = vset.pattern.permute.xlu0 0
    %83 = vperm.xlu0 %82, %v72
    %v84 = vpop.permute.xlu0 %83
    %85 = vset.pattern.permute.xlu0 0
    %86 = vperm.xlu0 %85, %v73
    %v87 = vpop.permute.xlu0 %86
    %88 = vset.pattern.permute.xlu0 0
    %89 = vperm.xlu0 %88, %v74
    %v90 = vpop.permute.xlu0 %89
    %91 = vset.pattern.permute.xlu0 0
    %92 = vperm.xlu0 %91, %v75
    %v93 = vpop.permute.xlu0 %92
    %94 = vset.pattern.permute.xlu0 0
    %95 = vperm.xlu0 %94, %v76
    %v96 = vpop.permute.xlu0 %95
    %97 = vset.pattern.permute.xlu0 0
    %98 = vperm.xlu0 %97, %v77
    %v99 = vpop.permute.xlu0 %98
    %100 = vset.pattern.permute.xlu0 0
    %101 = vperm.xlu0 %100, %v78
    %v102 = vpop.permute.xlu0 %101
    %103 = vset.pattern.permute.xlu0 0
    %104 = vperm.xlu0 %103, %v79
    %v105 = vpop.permute.xlu0 %104
    %vm106 = vcmp.eq.s32.totalorder %v81, %v84
    %vm107 = vcmp.eq.s32.totalorder %v81, %v87
    %vm108 = vcmp.eq.s32.totalorder %v81, %v90
    %vm109 = vcmp.eq.s32.totalorder %v81, %v93
    %vm110 = vcmp.eq.s32.totalorder %v81, %v96
    %vm111 = vcmp.eq.s32.totalorder %v81, %v99
    %vm112 = vcmp.eq.s32.totalorder %v81, %v102
    %vm113 = vcmp.eq.s32.totalorder %v81, %v105
    %v114 = vsel %vm106, 1, 0
    %v115 = vsel %vm107, 1, 0
    %v116 = vsel %vm108, 1, 0
    %v117 = vsel %vm109, 1, 0
    %v118 = vsel %vm110, 1, 0
    %v119 = vsel %vm111, 1, 0
    %v120 = vsel %vm112, 1, 0
    %v121 = vsel %vm113, 1, 0
    %v122 = vcvt.s32.f32 %v114
    %v123 = vcvt.s32.f32 %v115
    %v124 = vcvt.s32.f32 %v116
    %v125 = vcvt.s32.f32 %v117
    %v126 = vcvt.s32.f32 %v118
    %v127 = vcvt.s32.f32 %v119
    %v128 = vcvt.s32.f32 %v120
    %v129 = vcvt.s32.f32 %v121
    %v130 = vpack.c.bf16 %v123, %v122
    %v131 = vpack.c.bf16 %v125, %v124
    %v132 = vpack.c.bf16 %v127, %v126
    %v133 = vpack.c.bf16 %v129, %v128
    %vm134 = vcmp.ge.s32.totalorder %v72, 0
    %vm135 = vcmp.ge.s32.totalorder %v73, 0
    %vm136 = vcmp.ge.s32.totalorder %v74, 0
    %vm137 = vcmp.ge.s32.totalorder %v75, 0
    %vm138 = vcmp.ge.s32.totalorder %v76, 0
    %vm139 = vcmp.ge.s32.totalorder %v77, 0
    %vm140 = vcmp.ge.s32.totalorder %v78, 0
    %vm141 = vcmp.ge.s32.totalorder %v79, 0
    %v142 = vsel %vm134, 1, 0
    %v143 = vsel %vm135, 1, 0
    %v144 = vsel %vm136, 1, 0
    %v145 = vsel %vm137, 1, 0
    %v146 = vsel %vm138, 1, 0
    %v147 = vsel %vm139, 1, 0
    %v148 = vsel %vm140, 1, 0
    %v149 = vsel %vm141, 1, 0
    %v150 = vcvt.s32.f32 %v142
    %v151 = vcvt.s32.f32 %v143
    %v152 = vcvt.s32.f32 %v144
    %v153 = vcvt.s32.f32 %v145
    %v154 = vcvt.s32.f32 %v146
    %v155 = vcvt.s32.f32 %v147
    %v156 = vcvt.s32.f32 %v148
    %v157 = vcvt.s32.f32 %v149
    %v158 = vld [vmem:[#allocation3] sm:$0xff]
    %v159 = vld [vmem:[#allocation3 + $0x8] sm:$0xff]
    %v160 = vld [vmem:[#allocation3 + $0x10] sm:$0xff]
    %v161 = vld [vmem:[#allocation3 + $0x18] sm:$0xff]
    %v162 = vld [vmem:[#allocation3 + $0x20] sm:$0xff]
    %v163 = vld [vmem:[#allocation3 + $0x28] sm:$0xff]
    %v164 = vld [vmem:[#allocation3 + $0x30] sm:$0xff]
    %v165 = vld [vmem:[#allocation3 + $0x38] sm:$0xff]
    %v166 = vld [vmem:[#allocation3 + $0x40] sm:$0xff]
    %v167 = vld [vmem:[#allocation3 + $0x48] sm:$0xff]
    %v168 = vld [vmem:[#allocation3 + $0x50] sm:$0xff]
    %v169 = vld [vmem:[#allocation3 + $0x58] sm:$0xff]
    %v170 = vld [vmem:[#allocation3 + $0x60] sm:$0xff]
    %v171 = vld [vmem:[#allocation3 + $0x68] sm:$0xff]
    %v172 = vld [vmem:[#allocation3 + $0x70] sm:$0xff]
    %v173 = vld [vmem:[#allocation3 + $0x78] sm:$0xff]
    %v174 = vld [vmem:[%s4] sm:$0x3]
    %176 = vset.pattern.permute.xlu0 0
    %177 = vperm.xlu0 %176, %v150
    %v178 = vpop.permute.xlu0 %177
    %181 = vset.pattern.permute.xlu0 0
    %182 = vperm.xlu0 %181, %v151
    %v183 = vpop.permute.xlu0 %182
    %186 = vset.pattern.permute.xlu0 0
    %187 = vperm.xlu0 %186, %v152
    %v188 = vpop.permute.xlu0 %187
    %191 = vset.pattern.permute.xlu0 0
    %192 = vperm.xlu0 %191, %v153
    %v193 = vpop.permute.xlu0 %192
    %196 = vset.pattern.permute.xlu0 0
    %197 = vperm.xlu0 %196, %v154
    %v198 = vpop.permute.xlu0 %197
    %201 = vset.pattern.permute.xlu0 0
    %202 = vperm.xlu0 %201, %v155
    %v203 = vpop.permute.xlu0 %202
    %206 = vset.pattern.permute.xlu0 0
    %207 = vperm.xlu0 %206, %v156
    %v208 = vpop.permute.xlu0 %207
    %211 = vset.pattern.permute.xlu0 0
    %212 = vperm.xlu0 %211, %v157
    %v213 = vpop.permute.xlu0 %212
    %v216 = vlaneseq
    %v217 = vshrl.u32 %v216, 7
    %v218 = vsub.s32 0, %v217
    %v219 = vrot.slane %v174, %v218
    %v220 = vlaneseq
    %v221 = vshrl.u32 %v220, 7
    %v222 = vsub.s32 1, %v221
    %v223 = vrot.slane %v174, %v222
    %v226 = vmul.f32 %v178, %v219
    %v227 = vmul.f32 %v178, %v223
    %v228 = vmul.f32 %v183, %v219
    %v229 = vmul.f32 %v183, %v223
    %v230 = vmul.f32 %v188, %v219
    %v231 = vmul.f32 %v188, %v223
    %v232 = vmul.f32 %v193, %v219
    %v233 = vmul.f32 %v193, %v223
    %v234 = vmul.f32 %v198, %v219
    %v235 = vmul.f32 %v198, %v223
    %v236 = vmul.f32 %v203, %v219
    %v237 = vmul.f32 %v203, %v223
    %v238 = vmul.f32 %v208, %v219
    %v239 = vmul.f32 %v208, %v223
    %v240 = vmul.f32 %v213, %v219
    %v241 = vmul.f32 %v213, %v223
    %v258 = vunpack.c.l.b16 %v158
    %v259 = vunpack.c.h.b16 %v158
    %v260 = vunpack.c.l.b16 %v159
    %v261 = vunpack.c.h.b16 %v159
    %v262 = vunpack.c.l.b16 %v160
    %v263 = vunpack.c.h.b16 %v160
    %v264 = vunpack.c.l.b16 %v161
    %v265 = vunpack.c.h.b16 %v161
    %v266 = vunpack.c.l.b16 %v162
    %v267 = vunpack.c.h.b16 %v162
    %v268 = vunpack.c.l.b16 %v163
    %v269 = vunpack.c.h.b16 %v163
    %v270 = vunpack.c.l.b16 %v164
    %v271 = vunpack.c.h.b16 %v164
    %v272 = vunpack.c.l.b16 %v165
    %v273 = vunpack.c.h.b16 %v165
    %v274 = vunpack.c.l.b16 %v166
    %v275 = vunpack.c.h.b16 %v166
    %v276 = vunpack.c.l.b16 %v167
    %v277 = vunpack.c.h.b16 %v167
    %v278 = vunpack.c.l.b16 %v168
    %v279 = vunpack.c.h.b16 %v168
    %v280 = vunpack.c.l.b16 %v169
    %v281 = vunpack.c.h.b16 %v169
    %v282 = vunpack.c.l.b16 %v170
    %v283 = vunpack.c.h.b16 %v170
    %v284 = vunpack.c.l.b16 %v171
    %v285 = vunpack.c.h.b16 %v171
    %v286 = vunpack.c.l.b16 %v172
    %v287 = vunpack.c.h.b16 %v172
    %v288 = vunpack.c.l.b16 %v173
    %v289 = vunpack.c.h.b16 %v173
    %v290 = vpack.c.b16 %v260, %v258
    %v291 = vpack.c.b16 %v261, %v259
    %v292 = vpack.c.b16 %v264, %v262
    %v293 = vpack.c.b16 %v265, %v263
    %v294 = vpack.c.b16 %v268, %v266
    %v295 = vpack.c.b16 %v269, %v267
    %v296 = vpack.c.b16 %v272, %v270
    %v297 = vpack.c.b16 %v273, %v271
    %v298 = vpack.c.b16 %v276, %v274
    %v299 = vpack.c.b16 %v277, %v275
    %v300 = vpack.c.b16 %v280, %v278
    %v301 = vpack.c.b16 %v281, %v279
    %v302 = vpack.c.b16 %v284, %v282
    %v303 = vpack.c.b16 %v285, %v283
    %v304 = vpack.c.b16 %v288, %v286
    %v305 = vpack.c.b16 %v289, %v287
    %322 = vmatprep.subr.bf16.mxu0 %v291
    %323 = vmatpush1.bf16.msra.mxu0 %v290
    %324 = vmatprep.subr.bf16.mxu0 %v293
    %325 = vmatpush1.bf16.msra.mxu0 %v292
    %326 = vmatprep.subr.bf16.mxu0 %v295
    %327 = vmatpush1.bf16.msra.mxu0 %v294
    %328 = vmatprep.subr.bf16.mxu0 %v297
    %329 = vmatpush1.bf16.msra.mxu0 %v296
    %330 = vmatprep.subr.bf16.mxu0 %v299
    %331 = vmatpush1.bf16.msra.mxu0 %v298
    %332 = vmatprep.subr.bf16.mxu0 %v301
    %333 = vmatpush1.bf16.msra.mxu0 %v300
    %334 = vmatprep.subr.bf16.mxu0 %v303
    %335 = vmatpush1.bf16.msra.mxu0 %v302
    %336 = vmatprep.subr.bf16.mxu0 %v305
    %337 = vmatpush1.bf16.msra.mxu0 %v304
    %338 = vmatprep.subr.bf16.mxu0 0
    %339 = vmatpush1.bf16.msra.mxu0 0
    %340 = vmatprep.subr.bf16.mxu0 0
    %341 = vmatpush1.bf16.msra.mxu0 0
    %342 = vmatprep.subr.bf16.mxu0 0
    %343 = vmatpush1.bf16.msra.mxu0 0
    %344 = vmatprep.subr.bf16.mxu0 0
    %345 = vmatpush1.bf16.msra.mxu0 0
    %346 = vmatprep.subr.bf16.mxu0 0
    %347 = vmatpush1.bf16.msra.mxu0 0
    %348 = vmatprep.subr.bf16.mxu0 0
    %349 = vmatpush1.bf16.msra.mxu0 0
    %350 = vmatprep.subr.bf16.mxu0 0
    %351 = vmatpush1.bf16.msra.mxu0 0
    %352 = vmatprep.subr.bf16.mxu0 0
    %353 = vmatpush1.bf16.msra.mxu0 0
    %354 = vmatprep.mubr.bf16.mxu0 0
    %355 = vmatmul.mubr.bf16.gmra.mrb[0].mxu0 %v130
    %v356 = vpop.f32.mrb[0].mxu0
    %v357 = vadd.f32 %v226, %v356
    %v358 = vpop.f32.mrb[0].mxu0
    %v359 = vadd.f32 %v227, %v358
    %v360 = vpop.f32.mrb[0].mxu0
    %v361 = vadd.f32 %v228, %v360
    %v362 = vpop.f32.mrb[0].mxu0
    %v363 = vadd.f32 %v229, %v362
    %364 = vmatprep.mubr.bf16.mxu0 0
    %365 = vmatmul.mubr.bf16.gmra.mrb[0].mxu0 %v131
    %v366 = vpop.f32.mrb[0].mxu0
    %v367 = vadd.f32 %v230, %v366
    %v368 = vpop.f32.mrb[0].mxu0
    %v369 = vadd.f32 %v231, %v368
    %v370 = vpop.f32.mrb[0].mxu0
    %v371 = vadd.f32 %v232, %v370
    %v372 = vpop.f32.mrb[0].mxu0
    %v373 = vadd.f32 %v233, %v372
    %374 = vmatprep.mubr.bf16.mxu0 0
    %375 = vmatmul.mubr.bf16.gmra.mrb[0].mxu0 %v132
    %v376 = vpop.f32.mrb[0].mxu0
    %v377 = vadd.f32 %v234, %v376
    %v378 = vpop.f32.mrb[0].mxu0
    %v379 = vadd.f32 %v235, %v378
    %v380 = vpop.f32.mrb[0].mxu0
    %v381 = vadd.f32 %v236, %v380
    %v382 = vpop.f32.mrb[0].mxu0
    %v383 = vadd.f32 %v237, %v382
    %384 = vmatprep.mubr.bf16.mxu0 0
    %385 = vmatmul.mubr.bf16.gmra.mrb[0].mxu0 %v133
    %v386 = vpop.f32.mrb[0].mxu0
    %v387 = vadd.f32 %v238, %v386
    %v388 = vpop.f32.mrb[0].mxu0
    %v389 = vadd.f32 %v239, %v388
    %v390 = vpop.f32.mrb[0].mxu0
    %v391 = vadd.f32 %v240, %v390
    %v392 = vpop.f32.mrb[0].mxu0
    %v393 = vadd.f32 %v241, %v392
    %394 = vdwg.mxu0
    %395 = vst [vmem:[#allocation2] sm:$0xff] %v357
    %396 = vst [vmem:[#allocation2 + $0x8] sm:$0xff] %v359
    %397 = vst [vmem:[#allocation2 + $0x10] sm:$0xff] %v361
    %398 = vst [vmem:[#allocation2 + $0x18] sm:$0xff] %v363
    %399 = vst [vmem:[#allocation2 + $0x20] sm:$0xff] %v367
    %400 = vst [vmem:[#allocation2 + $0x28] sm:$0xff] %v369
    %401 = vst [vmem:[#allocation2 + $0x30] sm:$0xff] %v371
    %402 = vst [vmem:[#allocation2 + $0x38] sm:$0xff] %v373
    %403 = vst [vmem:[#allocation2 + $0x40] sm:$0xff] %v377
    %404 = vst [vmem:[#allocation2 + $0x48] sm:$0xff] %v379
    %405 = vst [vmem:[#allocation2 + $0x50] sm:$0xff] %v381
    %406 = vst [vmem:[#allocation2 + $0x58] sm:$0xff] %v383
    %407 = vst [vmem:[#allocation2 + $0x60] sm:$0xff] %v387
    %408 = vst [vmem:[#allocation2 + $0x68] sm:$0xff] %v389
    %409 = vst [vmem:[#allocation2 + $0x70] sm:$0xff] %v391
    %410 = vst [vmem:[#allocation2 + $0x78] sm:$0xff] %v393
    %v411 = vld [vmem:[%s1] sm:$0xff]
    %v412 = vld [vmem:[%s1 + $0x8] sm:$0xff]
    %s413 = smul.u32 0, 2
    %s414 = smul.addr %s413, 8
    %s415 = scalar_lea.vmem [#allocation2], %s414
    %v416 = vld [vmem:[%s415] sm:$0xff]
    %v417 = vld [vmem:[%s415 + $0x8] sm:$0xff]
    %v418 = vpack.c.bf16 %v411, %v411
    %v419 = vpack.c.bf16 %v412, %v412
    %v420 = vld [vmem:[#allocation6] sm:$0xff]
    %v421 = vld [vmem:[#allocation6 + $0x8] sm:$0xff]
    %v422 = vld [vmem:[#allocation6 + $0x10] sm:$0xff]
    %v423 = vld [vmem:[#allocation6 + $0x18] sm:$0xff]
    %v424 = vld [vmem:[#allocation6 + $0x20] sm:$0xff]
    %v425 = vld [vmem:[#allocation6 + $0x28] sm:$0xff]
    %v426 = vld [vmem:[#allocation6 + $0x30] sm:$0xff]
    %v427 = vld [vmem:[#allocation6 + $0x38] sm:$0xff]
    %v428 = vld [vmem:[#allocation6 + $0x40] sm:$0xff]
    %v429 = vld [vmem:[#allocation6 + $0x48] sm:$0xff]
    %v430 = vld [vmem:[#allocation6 + $0x50] sm:$0xff]
    %v431 = vld [vmem:[#allocation6 + $0x58] sm:$0xff]
    %v432 = vld [vmem:[#allocation6 + $0x60] sm:$0xff]
    %v433 = vld [vmem:[#allocation6 + $0x68] sm:$0xff]
    %v434 = vld [vmem:[#allocation6 + $0x70] sm:$0xff]
    %v435 = vld [vmem:[#allocation6 + $0x78] sm:$0xff]
    %v436 = vld [vmem:[#allocation6 + $0x80] sm:$0xff]
    %v437 = vld [vmem:[#allocation6 + $0x88] sm:$0xff]
    %v438 = vld [vmem:[#allocation6 + $0x90] sm:$0xff]
    %v439 = vld [vmem:[#allocation6 + $0x98] sm:$0xff]
    %v440 = vld [vmem:[#allocation6 + $0xa0] sm:$0xff]
    %v441 = vld [vmem:[#allocation6 + $0xa8] sm:$0xff]
    %v442 = vld [vmem:[#allocation6 + $0xb0] sm:$0xff]
    %v443 = vld [vmem:[#allocation6 + $0xb8] sm:$0xff]
    %v444 = vld [vmem:[#allocation6 + $0xc0] sm:$0xff]
    %v445 = vld [vmem:[#allocation6 + $0xc8] sm:$0xff]
    %v446 = vld [vmem:[#allocation6 + $0xd0] sm:$0xff]
    %v447 = vld [vmem:[#allocation6 + $0xd8] sm:$0xff]
    %v448 = vld [vmem:[#allocation6 + $0xe0] sm:$0xff]
    %v449 = vld [vmem:[#allocation6 + $0xe8] sm:$0xff]
    %v450 = vld [vmem:[#allocation6 + $0xf0] sm:$0xff]
    %v451 = vld [vmem:[#allocation6 + $0xf8] sm:$0xff]
    %v484 = vunpack.c.l.b16 %v420
    %v485 = vunpack.c.h.b16 %v420
    %v486 = vunpack.c.l.b16 %v421
    %v487 = vunpack.c.h.b16 %v421
    %v488 = vunpack.c.l.b16 %v422
    %v489 = vunpack.c.h.b16 %v422
    %v490 = vunpack.c.l.b16 %v423
    %v491 = vunpack.c.h.b16 %v423
    %v492 = vunpack.c.l.b16 %v424
    %v493 = vunpack.c.h.b16 %v424
    %v494 = vunpack.c.l.b16 %v425
    %v495 = vunpack.c.h.b16 %v425
    %v496 = vunpack.c.l.b16 %v426
    %v497 = vunpack.c.h.b16 %v426
    %v498 = vunpack.c.l.b16 %v427
    %v499 = vunpack.c.h.b16 %v427
    %v500 = vunpack.c.l.b16 %v428
    %v501 = vunpack.c.h.b16 %v428
    %v502 = vunpack.c.l.b16 %v429
    %v503 = vunpack.c.h.b16 %v429
    %v504 = vunpack.c.l.b16 %v430
    %v505 = vunpack.c.h.b16 %v430
    %v506 = vunpack.c.l.b16 %v431
    %v507 = vunpack.c.h.b16 %v431
    %v508 = vunpack.c.l.b16 %v432
    %v509 = vunpack.c.h.b16 %v432
    %v510 = vunpack.c.l.b16 %v433
    %v511 = vunpack.c.h.b16 %v433
    %v512 = vunpack.c.l.b16 %v434
    %v513 = vunpack.c.h.b16 %v434
    %v514 = vunpack.c.l.b16 %v435
    %v515 = vunpack.c.h.b16 %v435
    %v516 = vunpack.c.l.b16 %v436
    %v517 = vunpack.c.h.b16 %v436
    %v518 = vunpack.c.l.b16 %v437
    %v519 = vunpack.c.h.b16 %v437
    %v520 = vunpack.c.l.b16 %v438
    %v521 = vunpack.c.h.b16 %v438
    %v522 = vunpack.c.l.b16 %v439
    %v523 = vunpack.c.h.b16 %v439
    %v524 = vunpack.c.l.b16 %v440
    %v525 = vunpack.c.h.b16 %v440
    %v526 = vunpack.c.l.b16 %v441
    %v527 = vunpack.c.h.b16 %v441
    %v528 = vunpack.c.l.b16 %v442
    %v529 = vunpack.c.h.b16 %v442
    %v530 = vunpack.c.l.b16 %v443
    %v531 = vunpack.c.h.b16 %v443
    %v532 = vunpack.c.l.b16 %v444
    %v533 = vunpack.c.h.b16 %v444
    %v534 = vunpack.c.l.b16 %v445
    %v535 = vunpack.c.h.b16 %v445
    %v536 = vunpack.c.l.b16 %v446
    %v537 = vunpack.c.h.b16 %v446
    %v538 = vunpack.c.l.b16 %v447
    %v539 = vunpack.c.h.b16 %v447
    %v540 = vunpack.c.l.b16 %v448
    %v541 = vunpack.c.h.b16 %v448
    %v542 = vunpack.c.l.b16 %v449
    %v543 = vunpack.c.h.b16 %v449
    %v544 = vunpack.c.l.b16 %v450
    %v545 = vunpack.c.h.b16 %v450
    %v546 = vunpack.c.l.b16 %v451
    %v547 = vunpack.c.h.b16 %v451
    %v548 = vpack.c.b16 %v486, %v484
    %v549 = vpack.c.b16 %v487, %v485
    %v550 = vpack.c.b16 %v490, %v488
    %v551 = vpack.c.b16 %v491, %v489
    %v552 = vpack.c.b16 %v494, %v492
    %v553 = vpack.c.b16 %v495, %v493
    %v554 = vpack.c.b16 %v498, %v496
    %v555 = vpack.c.b16 %v499, %v497
    %v556 = vpack.c.b16 %v502, %v500
    %v557 = vpack.c.b16 %v503, %v501
    %v558 = vpack.c.b16 %v506, %v504
    %v559 = vpack.c.b16 %v507, %v505
    %v560 = vpack.c.b16 %v510, %v508
    %v561 = vpack.c.b16 %v511, %v509
    %v562 = vpack.c.b16 %v514, %v512
    %v563 = vpack.c.b16 %v515, %v513
    %v564 = vpack.c.b16 %v518, %v516
    %v565 = vpack.c.b16 %v519, %v517
    %v566 = vpack.c.b16 %v522, %v520
    %v567 = vpack.c.b16 %v523, %v521
    %v568 = vpack.c.b16 %v526, %v524
    %v569 = vpack.c.b16 %v527, %v525
    %v570 = vpack.c.b16 %v530, %v528
    %v571 = vpack.c.b16 %v531, %v529
    %v572 = vpack.c.b16 %v534, %v532
    %v573 = vpack.c.b16 %v535, %v533
    %v574 = vpack.c.b16 %v538, %v536
    %v575 = vpack.c.b16 %v539, %v537
    %v576 = vpack.c.b16 %v542, %v540
    %v577 = vpack.c.b16 %v543, %v541
    %v578 = vpack.c.b16 %v546, %v544
    %v579 = vpack.c.b16 %v547, %v545
    %612 = vmatprep.subr.bf16.mxu0 %v549
    %613 = vmatpush1.bf16.msra.mxu0 %v548
    %614 = vmatprep.subr.bf16.mxu0 %v551
    %615 = vmatpush1.bf16.msra.mxu0 %v550
    %616 = vmatprep.subr.bf16.mxu0 %v553
    %617 = vmatpush1.bf16.msra.mxu0 %v552
    %618 = vmatprep.subr.bf16.mxu0 %v555
    %619 = vmatpush1.bf16.msra.mxu0 %v554
    %620 = vmatprep.subr.bf16.mxu0 %v557
    %621 = vmatpush1.bf16.msra.mxu0 %v556
    %622 = vmatprep.subr.bf16.mxu0 %v559
    %623 = vmatpush1.bf16.msra.mxu0 %v558
    %624 = vmatprep.subr.bf16.mxu0 %v561
    %625 = vmatpush1.bf16.msra.mxu0 %v560
    %626 = vmatprep.subr.bf16.mxu0 %v563
    %627 = vmatpush1.bf16.msra.mxu0 %v562
    %628 = vmatprep.subr.bf16.mxu0 %v565
    %629 = vmatpush1.bf16.msra.mxu0 %v564
    %630 = vmatprep.subr.bf16.mxu0 %v567
    %631 = vmatpush1.bf16.msra.mxu0 %v566
    %632 = vmatprep.subr.bf16.mxu0 %v569
    %633 = vmatpush1.bf16.msra.mxu0 %v568
    %634 = vmatprep.subr.bf16.mxu0 %v571
    %635 = vmatpush1.bf16.msra.mxu0 %v570
    %636 = vmatprep.subr.bf16.mxu0 %v573
    %637 = vmatpush1.bf16.msra.mxu0 %v572
    %638 = vmatprep.subr.bf16.mxu0 %v575
    %639 = vmatpush1.bf16.msra.mxu0 %v574
    %640 = vmatprep.subr.bf16.mxu0 %v577
    %641 = vmatpush1.bf16.msra.mxu0 %v576
    %642 = vmatprep.subr.bf16.mxu0 %v579
    %643 = vmatpush1.bf16.msra.mxu0 %v578
    %644 = vmatprep.mubr.bf16.mxu0 %v419
    %645 = vmatmul.mubr.bf16.gmra.mrb[0].mxu0 %v418
    %v646 = vpop.f32.mrb[0].mxu0
    %v647 = vadd.f32 0.0, %v646
    %v648 = vpop.f32.mrb[0].mxu0
    %v649 = vadd.f32 0.0, %v648
    %v650 = vpop.f32.mrb[0].mxu0
    %v651 = vpop.f32.mrb[0].mxu0
    %652 = vdwg.mxu0
    %v653 = vadd.f32 %v416, %v647
    %v654 = vadd.f32 %v417, %v649
    %v655 = vtanh.pop %v653
    %v656 = vtanh.pop %v654
    %657 = vst [vmem:[%s415] sm:$0xff] %v655
    %658 = vst [vmem:[%s415 + $0x8] sm:$0xff] %v656
    %s659 = smul.u32 1, 2
    %s660 = smul.addr %s659, 8
    %s661 = scalar_lea.vmem [#allocation2], %s660
    %v662 = vld [vmem:[%s661] sm:$0xff]
    %v663 = vld [vmem:[%s661 + $0x8] sm:$0xff]
    %v664 = vpack.c.bf16 %v655, %v655
    %v665 = vpack.c.bf16 %v656, %v656
    %v666 = vld [vmem:[#allocation6] sm:$0xff]
    %v667 = vld [vmem:[#allocation6 + $0x8] sm:$0xff]
    %v668 = vld [vmem:[#allocation6 + $0x10] sm:$0xff]
    %v669 = vld [vmem:[#allocation6 + $0x18] sm:$0xff]
    %v670 = vld [vmem:[#allocation6 + $0x20] sm:$0xff]
    %v671 = vld [vmem:[#allocation6 + $0x28] sm:$0xff]
    %v672 = vld [vmem:[#allocation6 + $0x30] sm:$0xff]
    %v673 = vld [vmem:[#allocation6 + $0x38] sm:$0xff]
    %v674 = vld [vmem:[#allocation6 + $0x40] sm:$0xff]
    %v675 = vld [vmem:[#allocation6 + $0x48] sm:$0xff]
    %v676 = vld [vmem:[#allocation6 + $0x50] sm:$0xff]
    %v677 = vld [vmem:[#allocation6 + $0x58] sm:$0xff]
    %v678 = vld [vmem:[#allocation6 + $0x60] sm:$0xff]
    %v679 = vld [vmem:[#allocation6 + $0x68] sm:$0xff]
    %v680 = vld [vmem:[#allocation6 + $0x70] sm:$0xff]
    %v681 = vld [vmem:[#allocation6 + $0x78] sm:$0xff]
    %v682 = vld [vmem:[#allocation6 + $0x80] sm:$0xff]
    %v683 = vld [vmem:[#allocation6 + $0x88] sm:$0xff]
    %v684 = vld [vmem:[#allocation6 + $0x90] sm:$0xff]
    %v685 = vld [vmem:[#allocation6 + $0x98] sm:$0xff]
    %v686 = vld [vmem:[#allocation6 + $0xa0] sm:$0xff]
    %v687 = vld [vmem:[#allocation6 + $0xa8] sm:$0xff]
    %v688 = vld [vmem:[#allocation6 + $0xb0] sm:$0xff]
    %v689 = vld [vmem:[#allocation6 + $0xb8] sm:$0xff]
    %v690 = vld [vmem:[#allocation6 + $0xc0] sm:$0xff]
    %v691 = vld [vmem:[#allocation6 + $0xc8] sm:$0xff]
    %v692 = vld [vmem:[#allocation6 + $0xd0] sm:$0xff]
    %v693 = vld [vmem:[#allocation6 + $0xd8] sm:$0xff]
    %v694 = vld [vmem:[#allocation6 + $0xe0] sm:$0xff]
    %v695 = vld [vmem:[#allocation6 + $0xe8] sm:$0xff]
    %v696 = vld [vmem:[#allocation6 + $0xf0] sm:$0xff]
    %v697 = vld [vmem:[#allocation6 + $0xf8] sm:$0xff]
    %v730 = vunpack.c.l.b16 %v666
    %v731 = vunpack.c.h.b16 %v666
    %v732 = vunpack.c.l.b16 %v667
    %v733 = vunpack.c.h.b16 %v667
    %v734 = vunpack.c.l.b16 %v668
    %v735 = vunpack.c.h.b16 %v668
    %v736 = vunpack.c.l.b16 %v669
    %v737 = vunpack.c.h.b16 %v669
    %v738 = vunpack.c.l.b16 %v670
    %v739 = vunpack.c.h.b16 %v670
    %v740 = vunpack.c.l.b16 %v671
    %v741 = vunpack.c.h.b16 %v671
    %v742 = vunpack.c.l.b16 %v672
    %v743 = vunpack.c.h.b16 %v672
    %v744 = vunpack.c.l.b16 %v673
    %v745 = vunpack.c.h.b16 %v673
    %v746 = vunpack.c.l.b16 %v674
    %v747 = vunpack.c.h.b16 %v674
    %v748 = vunpack.c.l.b16 %v675
    %v749 = vunpack.c.h.b16 %v675
    %v750 = vunpack.c.l.b16 %v676
    %v751 = vunpack.c.h.b16 %v676
    %v752 = vunpack.c.l.b16 %v677
    %v753 = vunpack.c.h.b16 %v677
    %v754 = vunpack.c.l.b16 %v678
    %v755 = vunpack.c.h.b16 %v678
    %v756 = vunpack.c.l.b16 %v679
    %v757 = vunpack.c.h.b16 %v679
    %v758 = vunpack.c.l.b16 %v680
    %v759 = vunpack.c.h.b16 %v680
    %v760 = vunpack.c.l.b16 %v681
    %v761 = vunpack.c.h.b16 %v681
    %v762 = vunpack.c.l.b16 %v682
    %v763 = vunpack.c.h.b16 %v682
    %v764 = vunpack.c.l.b16 %v683
    %v765 = vunpack.c.h.b16 %v683
    %v766 = vunpack.c.l.b16 %v684
    %v767 = vunpack.c.h.b16 %v684
    %v768 = vunpack.c.l.b16 %v685
    %v769 = vunpack.c.h.b16 %v685
    %v770 = vunpack.c.l.b16 %v686
    %v771 = vunpack.c.h.b16 %v686
    %v772 = vunpack.c.l.b16 %v687
    %v773 = vunpack.c.h.b16 %v687
    %v774 = vunpack.c.l.b16 %v688
    %v775 = vunpack.c.h.b16 %v688
    %v776 = vunpack.c.l.b16 %v689
    %v777 = vunpack.c.h.b16 %v689
    %v778 = vunpack.c.l.b16 %v690
    %v779 = vunpack.c.h.b16 %v690
    %v780 = vunpack.c.l.b16 %v691
    %v781 = vunpack.c.h.b16 %v691
    %v782 = vunpack.c.l.b16 %v692
    %v783 = vunpack.c.h.b16 %v692
    %v784 = vunpack.c.l.b16 %v693
    %v785 = vunpack.c.h.b16 %v693
    %v786 = vunpack.c.l.b16 %v694
    %v787 = vunpack.c.h.b16 %v694
    %v788 = vunpack.c.l.b16 %v695
    %v789 = vunpack.c.h.b16 %v695
    %v790 = vunpack.c.l.b16 %v696
    %v791 = vunpack.c.h.b16 %v696
    %v792 = vunpack.c.l.b16 %v697
    %v793 = vunpack.c.h.b16 %v697
    %v794 = vpack.c.b16 %v732, %v730
    %v795 = vpack.c.b16 %v733, %v731
    %v796 = vpack.c.b16 %v736, %v734
    %v797 = vpack.c.b16 %v737, %v735
    %v798 = vpack.c.b16 %v740, %v738
    %v799 = vpack.c.b16 %v741, %v739
    %v800 = vpack.c.b16 %v744, %v742
    %v801 = vpack.c.b16 %v745, %v743
    %v802 = vpack.c.b16 %v748, %v746
    %v803 = vpack.c.b16 %v749, %v747
    %v804 = vpack.c.b16 %v752, %v750
    %v805 = vpack.c.b16 %v753, %v751
    %v806 = vpack.c.b16 %v756, %v754
    %v807 = vpack.c.b16 %v757, %v755
    %v808 = vpack.c.b16 %v760, %v758
    %v809 = vpack.c.b16 %v761, %v759
    %v810 = vpack.c.b16 %v764, %v762
    %v811 = vpack.c.b16 %v765, %v763
    %v812 = vpack.c.b16 %v768, %v766
    %v813 = vpack.c.b16 %v769, %v767
    %v814 = vpack.c.b16 %v772, %v770
    %v815 = vpack.c.b16 %v773, %v771
    %v816 = vpack.c.b16 %v776, %v774
    %v817 = vpack.c.b16 %v777, %v775
    %v818 = vpack.c.b16 %v780, %v778
    %v819 = vpack.c.b16 %v781, %v779
    %v820 = vpack.c.b16 %v784, %v782
    %v821 = vpack.c.b16 %v785, %v783
    %v822 = vpack.c.b16 %v788, %v786
    %v823 = vpack.c.b16 %v789, %v787
    %v824 = vpack.c.b16 %v792, %v790
    %v825 = vpack.c.b16 %v793, %v791
    %858 = vmatprep.subr.bf16.mxu0 %v795
    %859 = vmatpush1.bf16.msra.mxu0 %v794
    %860 = vmatprep.subr.bf16.mxu0 %v797
    %861 = vmatpush1.bf16.msra.mxu0 %v796
    %862 = vmatprep.subr.bf16.mxu0 %v799
    %863 = vmatpush1.bf16.msra.mxu0 %v798
    %864 = vmatprep.subr.bf16.mxu0 %v801
    %865 = vmatpush1.bf16.msra.mxu0 %v800
    %866 = vmatprep.subr.bf16.mxu0 %v803
    %867 = vmatpush1.bf16.msra.mxu0 %v802
    %868 = vmatprep.subr.bf16.mxu0 %v805
    %869 = vmatpush1.bf16.msra.mxu0 %v804
    %870 = vmatprep.subr.bf16.mxu0 %v807
    %871 = vmatpush1.bf16.msra.mxu0 %v806
    %872 = vmatprep.subr.bf16.mxu0 %v809
    %873 = vmatpush1.bf16.msra.mxu0 %v808
    %874 = vmatprep.subr.bf16.mxu0 %v811
    %875 = vmatpush1.bf16.msra.mxu0 %v810
    %876 = vmatprep.subr.bf16.mxu0 %v813
    %877 = vmatpush1.bf16.msra.mxu0 %v812
    %878 = vmatprep.subr.bf16.mxu0 %v815
    %879 = vmatpush1.bf16.msra.mxu0 %v814
    %880 = vmatprep.subr.bf16.mxu0 %v817
    %881 = vmatpush1.bf16.msra.mxu0 %v816
    %882 = vmatprep.subr.bf16.mxu0 %v819
    %883 = vmatpush1.bf16.msra.mxu0 %v818
    %884 = vmatprep.subr.bf16.mxu0 %v821
    %885 = vmatpush1.bf16.msra.mxu0 %v820
    %886 = vmatprep.subr.bf16.mxu0 %v823
    %887 = vmatpush1.bf16.msra.mxu0 %v822
    %888 = vmatprep.subr.bf16.mxu0 %v825
    %889 = vmatpush1.bf16.msra.mxu0 %v824
    %890 = vmatprep.mubr.bf16.mxu0 %v665
    %891 = vmatmul.mubr.bf16.gmra.mrb[0].mxu0 %v664
    %v892 = vpop.f32.mrb[0].mxu0
    %v893 = vadd.f32 0.0, %v892
    %v894 = vpop.f32.mrb[0].mxu0
    %v895 = vadd.f32 0.0, %v894
    %v896 = vpop.f32.mrb[0].mxu0
    %v897 = vpop.f32.mrb[0].mxu0
    %898 = vdwg.mxu0
    %v899 = vadd.f32 %v662, %v893
    %v900 = vadd.f32 %v663, %v895
    %v901 = vtanh.pop %v899
    %v902 = vtanh.pop %v900
    %903 = vst [vmem:[%s661] sm:$0xff] %v901
    %904 = vst [vmem:[%s661 + $0x8] sm:$0xff] %v902
    %s905 = smul.u32 2, 2
    %s906 = smul.addr %s905, 8
    %s907 = scalar_lea.vmem [#allocation2], %s906
    %v908 = vld [vmem:[%s907] sm:$0xff]
    %v909 = vld [vmem:[%s907 + $0x8] sm:$0xff]
    %v910 = vpack.c.bf16 %v901, %v901
    %v911 = vpack.c.bf16 %v902, %v902
    %v912 = vld [vmem:[#allocation6] sm:$0xff]
    %v913 = vld [vmem:[#allocation6 + $0x8] sm:$0xff]
    %v914 = vld [vmem:[#allocation6 + $0x10] sm:$0xff]
    %v915 = vld [vmem:[#allocation6 + $0x18] sm:$0xff]
    %v916 = vld [vmem:[#allocation6 + $0x20] sm:$0xff]
    %v917 = vld [vmem:[#allocation6 + $0x28] sm:$0xff]
    %v918 = vld [vmem:[#allocation6 + $0x30] sm:$0xff]
    %v919 = vld [vmem:[#allocation6 + $0x38] sm:$0xff]
    %v920 = vld [vmem:[#allocation6 + $0x40] sm:$0xff]
    %v921 = vld [vmem:[#allocation6 + $0x48] sm:$0xff]
    %v922 = vld [vmem:[#allocation6 + $0x50] sm:$0xff]
    %v923 = vld [vmem:[#allocation6 + $0x58] sm:$0xff]
    %v924 = vld [vmem:[#allocation6 + $0x60] sm:$0xff]
    %v925 = vld [vmem:[#allocation6 + $0x68] sm:$0xff]
    %v926 = vld [vmem:[#allocation6 + $0x70] sm:$0xff]
    %v927 = vld [vmem:[#allocation6 + $0x78] sm:$0xff]
    %v928 = vld [vmem:[#allocation6 + $0x80] sm:$0xff]
    %v929 = vld [vmem:[#allocation6 + $0x88] sm:$0xff]
    %v930 = vld [vmem:[#allocation6 + $0x90] sm:$0xff]
    %v931 = vld [vmem:[#allocation6 + $0x98] sm:$0xff]
    %v932 = vld [vmem:[#allocation6 + $0xa0] sm:$0xff]
    %v933 = vld [vmem:[#allocation6 + $0xa8] sm:$0xff]
    %v934 = vld [vmem:[#allocation6 + $0xb0] sm:$0xff]
    %v935 = vld [vmem:[#allocation6 + $0xb8] sm:$0xff]
    %v936 = vld [vmem:[#allocation6 + $0xc0] sm:$0xff]
    %v937 = vld [vmem:[#allocation6 + $0xc8] sm:$0xff]
    %v938 = vld [vmem:[#allocation6 + $0xd0] sm:$0xff]
    %v939 = vld [vmem:[#allocation6 + $0xd8] sm:$0xff]
    %v940 = vld [vmem:[#allocation6 + $0xe0] sm:$0xff]
    %v941 = vld [vmem:[#allocation6 + $0xe8] sm:$0xff]
    %v942 = vld [vmem:[#allocation6 + $0xf0] sm:$0xff]
    %v943 = vld [vmem:[#allocation6 + $0xf8] sm:$0xff]
    %v976 = vunpack.c.l.b16 %v912
    %v977 = vunpack.c.h.b16 %v912
    %v978 = vunpack.c.l.b16 %v913
    %v979 = vunpack.c.h.b16 %v913
    %v980 = vunpack.c.l.b16 %v914
    %v981 = vunpack.c.h.b16 %v914
    %v982 = vunpack.c.l.b16 %v915
    %v983 = vunpack.c.h.b16 %v915
    %v984 = vunpack.c.l.b16 %v916
    %v985 = vunpack.c.h.b16 %v916
    %v986 = vunpack.c.l.b16 %v917
    %v987 = vunpack.c.h.b16 %v917
    %v988 = vunpack.c.l.b16 %v918
    %v989 = vunpack.c.h.b16 %v918
    %v990 = vunpack.c.l.b16 %v919
    %v991 = vunpack.c.h.b16 %v919
    %v992 = vunpack.c.l.b16 %v920
    %v993 = vunpack.c.h.b16 %v920
    %v994 = vunpack.c.l.b16 %v921
    %v995 = vunpack.c.h.b16 %v921
    %v996 = vunpack.c.l.b16 %v922
    %v997 = vunpack.c.h.b16 %v922
    %v998 = vunpack.c.l.b16 %v923
    %v999 = vunpack.c.h.b16 %v923
    %v1000 = vunpack.c.l.b16 %v924
    %v1001 = vunpack.c.h.b16 %v924
    %v1002 = vunpack.c.l.b16 %v925
    %v1003 = vunpack.c.h.b16 %v925
    %v1004 = vunpack.c.l.b16 %v926
    %v1005 = vunpack.c.h.b16 %v926
    %v1006 = vunpack.c.l.b16 %v927
    %v1007 = vunpack.c.h.b16 %v927
    %v1008 = vunpack.c.l.b16 %v928
    %v1009 = vunpack.c.h.b16 %v928
    %v1010 = vunpack.c.l.b16 %v929
    %v1011 = vunpack.c.h.b16 %v929
    %v1012 = vunpack.c.l.b16 %v930
    %v1013 = vunpack.c.h.b16 %v930
    %v1014 = vunpack.c.l.b16 %v931
    %v1015 = vunpack.c.h.b16 %v931
    %v1016 = vunpack.c.l.b16 %v932
    %v1017 = vunpack.c.h.b16 %v932
    %v1018 = vunpack.c.l.b16 %v933
    %v1019 = vunpack.c.h.b16 %v933
    %v1020 = vunpack.c.l.b16 %v934
    %v1021 = vunpack.c.h.b16 %v934
    %v1022 = vunpack.c.l.b16 %v935
    %v1023 = vunpack.c.h.b16 %v935
    %v1024 = vunpack.c.l.b16 %v936
    %v1025 = vunpack.c.h.b16 %v936
    %v1026 = vunpack.c.l.b16 %v937
    %v1027 = vunpack.c.h.b16 %v937
    %v1028 = vunpack.c.l.b16 %v938
    %v1029 = vunpack.c.h.b16 %v938
    %v1030 = vunpack.c.l.b16 %v939
    %v1031 = vunpack.c.h.b16 %v939
    %v1032 = vunpack.c.l.b16 %v940
    %v1033 = vunpack.c.h.b16 %v940
    %v1034 = vunpack.c.l.b16 %v941
    %v1035 = vunpack.c.h.b16 %v941
    %v1036 = vunpack.c.l.b16 %v942
    %v1037 = vunpack.c.h.b16 %v942
    %v1038 = vunpack.c.l.b16 %v943
    %v1039 = vunpack.c.h.b16 %v943
    %v1040 = vpack.c.b16 %v978, %v976
    %v1041 = vpack.c.b16 %v979, %v977
    %v1042 = vpack.c.b16 %v982, %v980
    %v1043 = vpack.c.b16 %v983, %v981
    %v1044 = vpack.c.b16 %v986, %v984
    %v1045 = vpack.c.b16 %v987, %v985
    %v1046 = vpack.c.b16 %v990, %v988
    %v1047 = vpack.c.b16 %v991, %v989
    %v1048 = vpack.c.b16 %v994, %v992
    %v1049 = vpack.c.b16 %v995, %v993
    %v1050 = vpack.c.b16 %v998, %v996
    %v1051 = vpack.c.b16 %v999, %v997
    %v1052 = vpack.c.b16 %v1002, %v1000
    %v1053 = vpack.c.b16 %v1003, %v1001
    %v1054 = vpack.c.b16 %v1006, %v1004
    %v1055 = vpack.c.b16 %v1007, %v1005
    %v1056 = vpack.c.b16 %v1010, %v1008
    %v1057 = vpack.c.b16 %v1011, %v1009
    %v1058 = vpack.c.b16 %v1014, %v1012
    %v1059 = vpack.c.b16 %v1015, %v1013
    %v1060 = vpack.c.b16 %v1018, %v1016
    %v1061 = vpack.c.b16 %v1019, %v1017
    %v1062 = vpack.c.b16 %v1022, %v1020
    %v1063 = vpack.c.b16 %v1023, %v1021
    %v1064 = vpack.c.b16 %v1026, %v1024
    %v1065 = vpack.c.b16 %v1027, %v1025
    %v1066 = vpack.c.b16 %v1030, %v1028
    %v1067 = vpack.c.b16 %v1031, %v1029
    %v1068 = vpack.c.b16 %v1034, %v1032
    %v1069 = vpack.c.b16 %v1035, %v1033
    %v1070 = vpack.c.b16 %v1038, %v1036
    %v1071 = vpack.c.b16 %v1039, %v1037
    %1104 = vmatprep.subr.bf16.mxu0 %v1041
    %1105 = vmatpush1.bf16.msra.mxu0 %v1040
    %1106 = vmatprep.subr.bf16.mxu0 %v1043
    %1107 = vmatpush1.bf16.msra.mxu0 %v1042
    %1108 = vmatprep.subr.bf16.mxu0 %v1045
    %1109 = vmatpush1.bf16.msra.mxu0 %v1044
    %1110 = vmatprep.subr.bf16.mxu0 %v1047
    %1111 = vmatpush1.bf16.msra.mxu0 %v1046
    %1112 = vmatprep.subr.bf16.mxu0 %v1049
    %1113 = vmatpush1.bf16.msra.mxu0 %v1048
    %1114 = vmatprep.subr.bf16.mxu0 %v1051
    %1115 = vmatpush1.bf16.msra.mxu0 %v1050
    %1116 = vmatprep.subr.bf16.mxu0 %v1053
    %1117 = vmatpush1.bf16.msra.mxu0 %v1052
    %1118 = vmatprep.subr.bf16.mxu0 %v1055
    %1119 = vmatpush1.bf16.msra.mxu0 %v1054
    %1120 = vmatprep.subr.bf16.mxu0 %v1057
    %1121 = vmatpush1.bf16.msra.mxu0 %v1056
    %1122 = vmatprep.subr.bf16.mxu0 %v1059
    %1123 = vmatpush1.bf16.msra.mxu0 %v1058
    %1124 = vmatprep.subr.bf16.mxu0 %v1061
    %1125 = vmatpush1.bf16.msra.mxu0 %v1060
    %1126 = vmatprep.subr.bf16.mxu0 %v1063
    %1127 = vmatpush1.bf16.msra.mxu0 %v1062
    %1128 = vmatprep.subr.bf16.mxu0 %v1065
    %1129 = vmatpush1.bf16.msra.mxu0 %v1064
    %1130 = vmatprep.subr.bf16.mxu0 %v1067
    %1131 = vmatpush1.bf16.msra.mxu0 %v1066
    %1132 = vmatprep.subr.bf16.mxu0 %v1069
    %1133 = vmatpush1.bf16.msra.mxu0 %v1068
    %1134 = vmatprep.subr.bf16.mxu0 %v1071
    %1135 = vmatpush1.bf16.msra.mxu0 %v1070
    %1136 = vmatprep.mubr.bf16.mxu0 %v911
    %1137 = vmatmul.mubr.bf16.gmra.mrb[0].mxu0 %v910
    %v1138 = vpop.f32.mrb[0].mxu0
    %v1139 = vadd.f32 0.0, %v1138
    %v1140 = vpop.f32.mrb[0].mxu0
    %v1141 = vadd.f32 0.0, %v1140
    %v1142 = vpop.f32.mrb[0].mxu0
    %v1143 = vpop.f32.mrb[0].mxu0
    %1144 = vdwg.mxu0
    %v1145 = vadd.f32 %v908, %v1139
    %v1146 = vadd.f32 %v909, %v1141
    %v1147 = vtanh.pop %v1145
    %v1148 = vtanh.pop %v1146
    %1149 = vst [vmem:[%s907] sm:$0xff] %v1147
    %1150 = vst [vmem:[%s907 + $0x8] sm:$0xff] %v1148
    %s1151 = smul.u32 3, 2
    %s1152 = smul.addr %s1151, 8
    %s1153 = scalar_lea.vmem [#allocation2], %s1152
    %v1154 = vld [vmem:[%s1153] sm:$0xff]
    %v1155 = vld [vmem:[%s1153 + $0x8] sm:$0xff]
    %v1156 = vpack.c.bf16 %v1147, %v1147
    %v1157 = vpack.c.bf16 %v1148, %v1148
    %v1158 = vld [vmem:[#allocation6] sm:$0xff]
    %v1159 = vld [vmem:[#allocation6 + $0x8] sm:$0xff]
    %v1160 = vld [vmem:[#allocation6 + $0x10] sm:$0xff]
    %v1161 = vld [vmem:[#allocation6 + $0x18] sm:$0xff]
    %v1162 = vld [vmem:[#allocation6 + $0x20] sm:$0xff]
    %v1163 = vld [vmem:[#allocation6 + $0x28] sm:$0xff]
    %v1164 = vld [vmem:[#allocation6 + $0x30] sm:$0xff]
    %v1165 = vld [vmem:[#allocation6 + $0x38] sm:$0xff]
    %v1166 = vld [vmem:[#allocation6 + $0x40] sm:$0xff]
    %v1167 = vld [vmem:[#allocation6 + $0x48] sm:$0xff]
    %v1168 = vld [vmem:[#allocation6 + $0x50] sm:$0xff]
    %v1169 = vld [vmem:[#allocation6 + $0x58] sm:$0xff]
    %v1170 = vld [vmem:[#allocation6 + $0x60] sm:$0xff]
    %v1171 = vld [vmem:[#allocation6 + $0x68] sm:$0xff]
    %v1172 = vld [vmem:[#allocation6 + $0x70] sm:$0xff]
    %v1173 = vld [vmem:[#allocation6 + $0x78] sm:$0xff]
    %v1174 = vld [vmem:[#allocation6 + $0x80] sm:$0xff]
    %v1175 = vld [vmem:[#allocation6 + $0x88] sm:$0xff]
    %v1176 = vld [vmem:[#allocation6 + $0x90] sm:$0xff]
    %v1177 = vld [vmem:[#allocation6 + $0x98] sm:$0xff]
    %v1178 = vld [vmem:[#allocation6 + $0xa0] sm:$0xff]
    %v1179 = vld [vmem:[#allocation6 + $0xa8] sm:$0xff]
    %v1180 = vld [vmem:[#allocation6 + $0xb0] sm:$0xff]
    %v1181 = vld [vmem:[#allocation6 + $0xb8] sm:$0xff]
    %v1182 = vld [vmem:[#allocation6 + $0xc0] sm:$0xff]
    %v1183 = vld [vmem:[#allocation6 + $0xc8] sm:$0xff]
    %v1184 = vld [vmem:[#allocation6 + $0xd0] sm:$0xff]
    %v1185 = vld [vmem:[#allocation6 + $0xd8] sm:$0xff]
    %v1186 = vld [vmem:[#allocation6 + $0xe0] sm:$0xff]
    %v1187 = vld [vmem:[#allocation6 + $0xe8] sm:$0xff]
    %v1188 = vld [vmem:[#allocation6 + $0xf0] sm:$0xff]
    %v1189 = vld [vmem:[#allocation6 + $0xf8] sm:$0xff]
    %v1222 = vunpack.c.l.b16 %v1158
    %v1223 = vunpack.c.h.b16 %v1158
    %v1224 = vunpack.c.l.b16 %v1159
    %v1225 = vunpack.c.h.b16 %v1159
    %v1226 = vunpack.c.l.b16 %v1160
    %v1227 = vunpack.c.h.b16 %v1160
    %v1228 = vunpack.c.l.b16 %v1161
    %v1229 = vunpack.c.h.b16 %v1161
    %v1230 = vunpack.c.l.b16 %v1162
    %v1231 = vunpack.c.h.b16 %v1162
    %v1232 = vunpack.c.l.b16 %v1163
    %v1233 = vunpack.c.h.b16 %v1163
    %v1234 = vunpack.c.l.b16 %v1164
    %v1235 = vunpack.c.h.b16 %v1164
    %v1236 = vunpack.c.l.b16 %v1165
    %v1237 = vunpack.c.h.b16 %v1165
    %v1238 = vunpack.c.l.b16 %v1166
    %v1239 = vunpack.c.h.b16 %v1166
    %v1240 = vunpack.c.l.b16 %v1167
    %v1241 = vunpack.c.h.b16 %v1167
    %v1242 = vunpack.c.l.b16 %v1168
    %v1243 = vunpack.c.h.b16 %v1168
    %v1244 = vunpack.c.l.b16 %v1169
    %v1245 = vunpack.c.h.b16 %v1169
    %v1246 = vunpack.c.l.b16 %v1170
    %v1247 = vunpack.c.h.b16 %v1170
    %v1248 = vunpack.c.l.b16 %v1171
    %v1249 = vunpack.c.h.b16 %v1171
    %v1250 = vunpack.c.l.b16 %v1172
    %v1251 = vunpack.c.h.b16 %v1172
    %v1252 = vunpack.c.l.b16 %v1173
    %v1253 = vunpack.c.h.b16 %v1173
    %v1254 = vunpack.c.l.b16 %v1174
    %v1255 = vunpack.c.h.b16 %v1174
    %v1256 = vunpack.c.l.b16 %v1175
    %v1257 = vunpack.c.h.b16 %v1175
    %v1258 = vunpack.c.l.b16 %v1176
    %v1259 = vunpack.c.h.b16 %v1176
    %v1260 = vunpack.c.l.b16 %v1177
    %v1261 = vunpack.c.h.b16 %v1177
    %v1262 = vunpack.c.l.b16 %v1178
    %v1263 = vunpack.c.h.b16 %v1178
    %v1264 = vunpack.c.l.b16 %v1179
    %v1265 = vunpack.c.h.b16 %v1179
    %v1266 = vunpack.c.l.b16 %v1180
    %v1267 = vunpack.c.h.b16 %v1180
    %v1268 = vunpack.c.l.b16 %v1181
    %v1269 = vunpack.c.h.b16 %v1181
    %v1270 = vunpack.c.l.b16 %v1182
    %v1271 = vunpack.c.h.b16 %v1182
    %v1272 = vunpack.c.l.b16 %v1183
    %v1273 = vunpack.c.h.b16 %v1183
    %v1274 = vunpack.c.l.b16 %v1184
    %v1275 = vunpack.c.h.b16 %v1184
    %v1276 = vunpack.c.l.b16 %v1185
    %v1277 = vunpack.c.h.b16 %v1185
    %v1278 = vunpack.c.l.b16 %v1186
    %v1279 = vunpack.c.h.b16 %v1186
    %v1280 = vunpack.c.l.b16 %v1187
    %v1281 = vunpack.c.h.b16 %v1187
    %v1282 = vunpack.c.l.b16 %v1188
    %v1283 = vunpack.c.h.b16 %v1188
    %v1284 = vunpack.c.l.b16 %v1189
    %v1285 = vunpack.c.h.b16 %v1189
    %v1286 = vpack.c.b16 %v1224, %v1222
    %v1287 = vpack.c.b16 %v1225, %v1223
    %v1288 = vpack.c.b16 %v1228, %v1226
    %v1289 = vpack.c.b16 %v1229, %v1227
    %v1290 = vpack.c.b16 %v1232, %v1230
    %v1291 = vpack.c.b16 %v1233, %v1231
    %v1292 = vpack.c.b16 %v1236, %v1234
    %v1293 = vpack.c.b16 %v1237, %v1235
    %v1294 = vpack.c.b16 %v1240, %v1238
    %v1295 = vpack.c.b16 %v1241, %v1239
    %v1296 = vpack.c.b16 %v1244, %v1242
    %v1297 = vpack.c.b16 %v1245, %v1243
    %v1298 = vpack.c.b16 %v1248, %v1246
    %v1299 = vpack.c.b16 %v1249, %v1247
    %v1300 = vpack.c.b16 %v1252, %v1250
    %v1301 = vpack.c.b16 %v1253, %v1251
    %v1302 = vpack.c.b16 %v1256, %v1254
    %v1303 = vpack.c.b16 %v1257, %v1255
    %v1304 = vpack.c.b16 %v1260, %v1258
    %v1305 = vpack.c.b16 %v1261, %v1259
    %v1306 = vpack.c.b16 %v1264, %v1262
    %v1307 = vpack.c.b16 %v1265, %v1263
    %v1308 = vpack.c.b16 %v1268, %v1266
    %v1309 = vpack.c.b16 %v1269, %v1267
    %v1310 = vpack.c.b16 %v1272, %v1270
    %v1311 = vpack.c.b16 %v1273, %v1271
    %v1312 = vpack.c.b16 %v1276, %v1274
    %v1313 = vpack.c.b16 %v1277, %v1275
    %v1314 = vpack.c.b16 %v1280, %v1278
    %v1315 = vpack.c.b16 %v1281, %v1279
    %v1316 = vpack.c.b16 %v1284, %v1282
    %v1317 = vpack.c.b16 %v1285, %v1283
    %1350 = vmatprep.subr.bf16.mxu0 %v1287
    %1351 = vmatpush1.bf16.msra.mxu0 %v1286
    %1352 = vmatprep.subr.bf16.mxu0 %v1289
    %1353 = vmatpush1.bf16.msra.mxu0 %v1288
    %1354 = vmatprep.subr.bf16.mxu0 %v1291
    %1355 = vmatpush1.bf16.msra.mxu0 %v1290
    %1356 = vmatprep.subr.bf16.mxu0 %v1293
    %1357 = vmatpush1.bf16.msra.mxu0 %v1292
    %1358 = vmatprep.subr.bf16.mxu0 %v1295
    %1359 = vmatpush1.bf16.msra.mxu0 %v1294
    %1360 = vmatprep.subr.bf16.mxu0 %v1297
    %1361 = vmatpush1.bf16.msra.mxu0 %v1296
    %1362 = vmatprep.subr.bf16.mxu0 %v1299
    %1363 = vmatpush1.bf16.msra.mxu0 %v1298
    %1364 = vmatprep.subr.bf16.mxu0 %v1301
    %1365 = vmatpush1.bf16.msra.mxu0 %v1300
    %1366 = vmatprep.subr.bf16.mxu0 %v1303
    %1367 = vmatpush1.bf16.msra.mxu0 %v1302
    %1368 = vmatprep.subr.bf16.mxu0 %v1305
    %1369 = vmatpush1.bf16.msra.mxu0 %v1304
    %1370 = vmatprep.subr.bf16.mxu0 %v1307
    %1371 = vmatpush1.bf16.msra.mxu0 %v1306
    %1372 = vmatprep.subr.bf16.mxu0 %v1309
    %1373 = vmatpush1.bf16.msra.mxu0 %v1308
    %1374 = vmatprep.subr.bf16.mxu0 %v1311
    %1375 = vmatpush1.bf16.msra.mxu0 %v1310
    %1376 = vmatprep.subr.bf16.mxu0 %v1313
    %1377 = vmatpush1.bf16.msra.mxu0 %v1312
    %1378 = vmatprep.subr.bf16.mxu0 %v1315
    %1379 = vmatpush1.bf16.msra.mxu0 %v1314
    %1380 = vmatprep.subr.bf16.mxu0 %v1317
    %1381 = vmatpush1.bf16.msra.mxu0 %v1316
    %1382 = vmatprep.mubr.bf16.mxu0 %v1157
    %1383 = vmatmul.mubr.bf16.gmra.mrb[0].mxu0 %v1156
    %v1384 = vpop.f32.mrb[0].mxu0
    %v1385 = vadd.f32 0.0, %v1384
    %v1386 = vpop.f32.mrb[0].mxu0
    %v1387 = vadd.f32 0.0, %v1386
    %v1388 = vpop.f32.mrb[0].mxu0
    %v1389 = vpop.f32.mrb[0].mxu0
    %1390 = vdwg.mxu0
    %v1391 = vadd.f32 %v1154, %v1385
    %v1392 = vadd.f32 %v1155, %v1387
    %v1393 = vtanh.pop %v1391
    %v1394 = vtanh.pop %v1392
    %1395 = vst [vmem:[%s1153] sm:$0xff] %v1393
    %1396 = vst [vmem:[%s1153 + $0x8] sm:$0xff] %v1394
    %s1397 = smul.u32 4, 2
    %s1398 = smul.addr %s1397, 8
    %s1399 = scalar_lea.vmem [#allocation2], %s1398
    %v1400 = vld [vmem:[%s1399] sm:$0xff]
    %v1401 = vld [vmem:[%s1399 + $0x8] sm:$0xff]
    %v1402 = vpack.c.bf16 %v1393, %v1393
    %v1403 = vpack.c.bf16 %v1394, %v1394
    %v1404 = vld [vmem:[#allocation6] sm:$0xff]
    %v1405 = vld [vmem:[#allocation6 + $0x8] sm:$0xff]
    %v1406 = vld [vmem:[#allocation6 + $0x10] sm:$0xff]
    %v1407 = vld [vmem:[#allocation6 + $0x18] sm:$0xff]
    %v1408 = vld [vmem:[#allocation6 + $0x20] sm:$0xff]
    %v1409 = vld [vmem:[#allocation6 + $0x28] sm:$0xff]
    %v1410 = vld [vmem:[#allocation6 + $0x30] sm:$0xff]
    %v1411 = vld [vmem:[#allocation6 + $0x38] sm:$0xff]
    %v1412 = vld [vmem:[#allocation6 + $0x40] sm:$0xff]
    %v1413 = vld [vmem:[#allocation6 + $0x48] sm:$0xff]
    %v1414 = vld [vmem:[#allocation6 + $0x50] sm:$0xff]
    %v1415 = vld [vmem:[#allocation6 + $0x58] sm:$0xff]
    %v1416 = vld [vmem:[#allocation6 + $0x60] sm:$0xff]
    %v1417 = vld [vmem:[#allocation6 + $0x68] sm:$0xff]
    %v1418 = vld [vmem:[#allocation6 + $0x70] sm:$0xff]
    %v1419 = vld [vmem:[#allocation6 + $0x78] sm:$0xff]
    %v1420 = vld [vmem:[#allocation6 + $0x80] sm:$0xff]
    %v1421 = vld [vmem:[#allocation6 + $0x88] sm:$0xff]
    %v1422 = vld [vmem:[#allocation6 + $0x90] sm:$0xff]
    %v1423 = vld [vmem:[#allocation6 + $0x98] sm:$0xff]
    %v1424 = vld [vmem:[#allocation6 + $0xa0] sm:$0xff]
    %v1425 = vld [vmem:[#allocation6 + $0xa8] sm:$0xff]
    %v1426 = vld [vmem:[#allocation6 + $0xb0] sm:$0xff]
    %v1427 = vld [vmem:[#allocation6 + $0xb8] sm:$0xff]
    %v1428 = vld [vmem:[#allocation6 + $0xc0] sm:$0xff]
    %v1429 = vld [vmem:[#allocation6 + $0xc8] sm:$0xff]
    %v1430 = vld [vmem:[#allocation6 + $0xd0] sm:$0xff]
    %v1431 = vld [vmem:[#allocation6 + $0xd8] sm:$0xff]
    %v1432 = vld [vmem:[#allocation6 + $0xe0] sm:$0xff]
    %v1433 = vld [vmem:[#allocation6 + $0xe8] sm:$0xff]
    %v1434 = vld [vmem:[#allocation6 + $0xf0] sm:$0xff]
    %v1435 = vld [vmem:[#allocation6 + $0xf8] sm:$0xff]
    %v1468 = vunpack.c.l.b16 %v1404
    %v1469 = vunpack.c.h.b16 %v1404
    %v1470 = vunpack.c.l.b16 %v1405
    %v1471 = vunpack.c.h.b16 %v1405
    %v1472 = vunpack.c.l.b16 %v1406
    %v1473 = vunpack.c.h.b16 %v1406
    %v1474 = vunpack.c.l.b16 %v1407
    %v1475 = vunpack.c.h.b16 %v1407
    %v1476 = vunpack.c.l.b16 %v1408
    %v1477 = vunpack.c.h.b16 %v1408
    %v1478 = vunpack.c.l.b16 %v1409
    %v1479 = vunpack.c.h.b16 %v1409
    %v1480 = vunpack.c.l.b16 %v1410
    %v1481 = vunpack.c.h.b16 %v1410
    %v1482 = vunpack.c.l.b16 %v1411
    %v1483 = vunpack.c.h.b16 %v1411
    %v1484 = vunpack.c.l.b16 %v1412
    %v1485 = vunpack.c.h.b16 %v1412
    %v1486 = vunpack.c.l.b16 %v1413
    %v1487 = vunpack.c.h.b16 %v1413
    %v1488 = vunpack.c.l.b16 %v1414
    %v1489 = vunpack.c.h.b16 %v1414
    %v1490 = vunpack.c.l.b16 %v1415
    %v1491 = vunpack.c.h.b16 %v1415
    %v1492 = vunpack.c.l.b16 %v1416
    %v1493 = vunpack.c.h.b16 %v1416
    %v1494 = vunpack.c.l.b16 %v1417
    %v1495 = vunpack.c.h.b16 %v1417
    %v1496 = vunpack.c.l.b16 %v1418
    %v1497 = vunpack.c.h.b16 %v1418
    %v1498 = vunpack.c.l.b16 %v1419
    %v1499 = vunpack.c.h.b16 %v1419
    %v1500 = vunpack.c.l.b16 %v1420
    %v1501 = vunpack.c.h.b16 %v1420
    %v1502 = vunpack.c.l.b16 %v1421
    %v1503 = vunpack.c.h.b16 %v1421
    %v1504 = vunpack.c.l.b16 %v1422
    %v1505 = vunpack.c.h.b16 %v1422
    %v1506 = vunpack.c.l.b16 %v1423
    %v1507 = vunpack.c.h.b16 %v1423
    %v1508 = vunpack.c.l.b16 %v1424
    %v1509 = vunpack.c.h.b16 %v1424
    %v1510 = vunpack.c.l.b16 %v1425
    %v1511 = vunpack.c.h.b16 %v1425
    %v1512 = vunpack.c.l.b16 %v1426
    %v1513 = vunpack.c.h.b16 %v1426
    %v1514 = vunpack.c.l.b16 %v1427
    %v1515 = vunpack.c.h.b16 %v1427
    %v1516 = vunpack.c.l.b16 %v1428
    %v1517 = vunpack.c.h.b16 %v1428
    %v1518 = vunpack.c.l.b16 %v1429
    %v1519 = vunpack.c.h.b16 %v1429
    %v1520 = vunpack.c.l.b16 %v1430
    %v1521 = vunpack.c.h.b16 %v1430
    %v1522 = vunpack.c.l.b16 %v1431
    %v1523 = vunpack.c.h.b16 %v1431
    %v1524 = vunpack.c.l.b16 %v1432
    %v1525 = vunpack.c.h.b16 %v1432
    %v1526 = vunpack.c.l.b16 %v1433
    %v1527 = vunpack.c.h.b16 %v1433
    %v1528 = vunpack.c.l.b16 %v1434
    %v1529 = vunpack.c.h.b16 %v1434
    %v1530 = vunpack.c.l.b16 %v1435
    %v1531 = vunpack.c.h.b16 %v1435
    %v1532 = vpack.c.b16 %v1470, %v1468
    %v1533 = vpack.c.b16 %v1471, %v1469
    %v1534 = vpack.c.b16 %v1474, %v1472
    %v1535 = vpack.c.b16 %v1475, %v1473
    %v1536 = vpack.c.b16 %v1478, %v1476
    %v1537 = vpack.c.b16 %v1479, %v1477
    %v1538 = vpack.c.b16 %v1482, %v1480
    %v1539 = vpack.c.b16 %v1483, %v1481
    %v1540 = vpack.c.b16 %v1486, %v1484
    %v1541 = vpack.c.b16 %v1487, %v1485
    %v1542 = vpack.c.b16 %v1490, %v1488
    %v1543 = vpack.c.b16 %v1491, %v1489
    %v1544 = vpack.c.b16 %v1494, %v1492
    %v1545 = vpack.c.b16 %v1495, %v1493
    %v1546 = vpack.c.b16 %v1498, %v1496
    %v1547 = vpack.c.b16 %v1499, %v1497
    %v1548 = vpack.c.b16 %v1502, %v1500
    %v1549 = vpack.c.b16 %v1503, %v1501
    %v1550 = vpack.c.b16 %v1506, %v1504
    %v1551 = vpack.c.b16 %v1507, %v1505
    %v1552 = vpack.c.b16 %v1510, %v1508
    %v1553 = vpack.c.b16 %v1511, %v1509
    %v1554 = vpack.c.b16 %v1514, %v1512
    %v1555 = vpack.c.b16 %v1515, %v1513
    %v1556 = vpack.c.b16 %v1518, %v1516
    %v1557 = vpack.c.b16 %v1519, %v1517
    %v1558 = vpack.c.b16 %v1522, %v1520
    %v1559 = vpack.c.b16 %v1523, %v1521
    %v1560 = vpack.c.b16 %v1526, %v1524
    %v1561 = vpack.c.b16 %v1527, %v1525
    %v1562 = vpack.c.b16 %v1530, %v1528
    %v1563 = vpack.c.b16 %v1531, %v1529
    %1596 = vmatprep.subr.bf16.mxu0 %v1533
    %1597 = vmatpush1.bf16.msra.mxu0 %v1532
    %1598 = vmatprep.subr.bf16.mxu0 %v1535
    %1599 = vmatpush1.bf16.msra.mxu0 %v1534
    %1600 = vmatprep.subr.bf16.mxu0 %v1537
    %1601 = vmatpush1.bf16.msra.mxu0 %v1536
    %1602 = vmatprep.subr.bf16.mxu0 %v1539
    %1603 = vmatpush1.bf16.msra.mxu0 %v1538
    %1604 = vmatprep.subr.bf16.mxu0 %v1541
    %1605 = vmatpush1.bf16.msra.mxu0 %v1540
    %1606 = vmatprep.subr.bf16.mxu0 %v1543
    %1607 = vmatpush1.bf16.msra.mxu0 %v1542
    %1608 = vmatprep.subr.bf16.mxu0 %v1545
    %1609 = vmatpush1.bf16.msra.mxu0 %v1544
    %1610 = vmatprep.subr.bf16.mxu0 %v1547
    %1611 = vmatpush1.bf16.msra.mxu0 %v1546
    %1612 = vmatprep.subr.bf16.mxu0 %v1549
    %1613 = vmatpush1.bf16.msra.mxu0 %v1548
    %1614 = vmatprep.subr.bf16.mxu0 %v1551
    %1615 = vmatpush1.bf16.msra.mxu0 %v1550
    %1616 = vmatprep.subr.bf16.mxu0 %v1553
    %1617 = vmatpush1.bf16.msra.mxu0 %v1552
    %1618 = vmatprep.subr.bf16.mxu0 %v1555
    %1619 = vmatpush1.bf16.msra.mxu0 %v1554
    %1620 = vmatprep.subr.bf16.mxu0 %v1557
    %1621 = vmatpush1.bf16.msra.mxu0 %v1556
    %1622 = vmatprep.subr.bf16.mxu0 %v1559
    %1623 = vmatpush1.bf16.msra.mxu0 %v1558
    %1624 = vmatprep.subr.bf16.mxu0 %v1561
    %1625 = vmatpush1.bf16.msra.mxu0 %v1560
    %1626 = vmatprep.subr.bf16.mxu0 %v1563
    %1627 = vmatpush1.bf16.msra.mxu0 %v1562
    %1628 = vmatprep.mubr.bf16.mxu0 %v1403
    %1629 = vmatmul.mubr.bf16.gmra.mrb[0].mxu0 %v1402
    %v1630 = vpop.f32.mrb[0].mxu0
    %v1631 = vadd.f32 0.0, %v1630
    %v1632 = vpop.f32.mrb[0].mxu0
    %v1633 = vadd.f32 0.0, %v1632
    %v1634 = vpop.f32.mrb[0].mxu0
    %v1635 = vpop.f32.mrb[0].mxu0
    %1636 = vdwg.mxu0
    %v1637 = vadd.f32 %v1400, %v1631
    %v1638 = vadd.f32 %v1401, %v1633
    %v1639 = vtanh.pop %v1637
    %v1640 = vtanh.pop %v1638
    %1641 = vst [vmem:[%s1399] sm:$0xff] %v1639
    %1642 = vst [vmem:[%s1399 + $0x8] sm:$0xff] %v1640
    %s1643 = smul.u32 5, 2
    %s1644 = smul.addr %s1643, 8
    %s1645 = scalar_lea.vmem [#allocation2], %s1644
    %v1646 = vld [vmem:[%s1645] sm:$0xff]
    %v1647 = vld [vmem:[%s1645 + $0x8] sm:$0xff]
    %v1648 = vpack.c.bf16 %v1639, %v1639
    %v1649 = vpack.c.bf16 %v1640, %v1640
    %v1650 = vld [vmem:[#allocation6] sm:$0xff]
    %v1651 = vld [vmem:[#allocation6 + $0x8] sm:$0xff]
    %v1652 = vld [vmem:[#allocation6 + $0x10] sm:$0xff]
    %v1653 = vld [vmem:[#allocation6 + $0x18] sm:$0xff]
    %v1654 = vld [vmem:[#allocation6 + $0x20] sm:$0xff]
    %v1655 = vld [vmem:[#allocation6 + $0x28] sm:$0xff]
    %v1656 = vld [vmem:[#allocation6 + $0x30] sm:$0xff]
    %v1657 = vld [vmem:[#allocation6 + $0x38] sm:$0xff]
    %v1658 = vld [vmem:[#allocation6 + $0x40] sm:$0xff]
    %v1659 = vld [vmem:[#allocation6 + $0x48] sm:$0xff]
    %v1660 = vld [vmem:[#allocation6 + $0x50] sm:$0xff]
    %v1661 = vld [vmem:[#allocation6 + $0x58] sm:$0xff]
    %v1662 = vld [vmem:[#allocation6 + $0x60] sm:$0xff]
    %v1663 = vld [vmem:[#allocation6 + $0x68] sm:$0xff]
    %v1664 = vld [vmem:[#allocation6 + $0x70] sm:$0xff]
    %v1665 = vld [vmem:[#allocation6 + $0x78] sm:$0xff]
    %v1666 = vld [vmem:[#allocation6 + $0x80] sm:$0xff]
    %v1667 = vld [vmem:[#allocation6 + $0x88] sm:$0xff]
    %v1668 = vld [vmem:[#allocation6 + $0x90] sm:$0xff]
    %v1669 = vld [vmem:[#allocation6 + $0x98] sm:$0xff]
    %v1670 = vld [vmem:[#allocation6 + $0xa0] sm:$0xff]
    %v1671 = vld [vmem:[#allocation6 + $0xa8] sm:$0xff]
    %v1672 = vld [vmem:[#allocation6 + $0xb0] sm:$0xff]
    %v1673 = vld [vmem:[#allocation6 + $0xb8] sm:$0xff]
    %v1674 = vld [vmem:[#allocation6 + $0xc0] sm:$0xff]
    %v1675 = vld [vmem:[#allocation6 + $0xc8] sm:$0xff]
    %v1676 = vld [vmem:[#allocation6 + $0xd0] sm:$0xff]
    %v1677 = vld [vmem:[#allocation6 + $0xd8] sm:$0xff]
    %v1678 = vld [vmem:[#allocation6 + $0xe0] sm:$0xff]
    %v1679 = vld [vmem:[#allocation6 + $0xe8] sm:$0xff]
    %v1680 = vld [vmem:[#allocation6 + $0xf0] sm:$0xff]
    %v1681 = vld [vmem:[#allocation6 + $0xf8] sm:$0xff]
    %v1714 = vunpack.c.l.b16 %v1650
    %v1715 = vunpack.c.h.b16 %v1650
    %v1716 = vunpack.c.l.b16 %v1651
    %v1717 = vunpack.c.h.b16 %v1651
    %v1718 = vunpack.c.l.b16 %v1652
    %v1719 = vunpack.c.h.b16 %v1652
    %v1720 = vunpack.c.l.b16 %v1653
    %v1721 = vunpack.c.h.b16 %v1653
    %v1722 = vunpack.c.l.b16 %v1654
    %v1723 = vunpack.c.h.b16 %v1654
    %v1724 = vunpack.c.l.b16 %v1655
    %v1725 = vunpack.c.h.b16 %v1655
    %v1726 = vunpack.c.l.b16 %v1656
    %v1727 = vunpack.c.h.b16 %v1656
    %v1728 = vunpack.c.l.b16 %v1657
    %v1729 = vunpack.c.h.b16 %v1657
    %v1730 = vunpack.c.l.b16 %v1658
    %v1731 = vunpack.c.h.b16 %v1658
    %v1732 = vunpack.c.l.b16 %v1659
    %v1733 = vunpack.c.h.b16 %v1659
    %v1734 = vunpack.c.l.b16 %v1660
    %v1735 = vunpack.c.h.b16 %v1660
    %v1736 = vunpack.c.l.b16 %v1661
    %v1737 = vunpack.c.h.b16 %v1661
    %v1738 = vunpack.c.l.b16 %v1662
    %v1739 = vunpack.c.h.b16 %v1662
    %v1740 = vunpack.c.l.b16 %v1663
    %v1741 = vunpack.c.h.b16 %v1663
    %v1742 = vunpack.c.l.b16 %v1664
    %v1743 = vunpack.c.h.b16 %v1664
    %v1744 = vunpack.c.l.b16 %v1665
    %v1745 = vunpack.c.h.b16 %v1665
    %v1746 = vunpack.c.l.b16 %v1666
    %v1747 = vunpack.c.h.b16 %v1666
    %v1748 = vunpack.c.l.b16 %v1667
    %v1749 = vunpack.c.h.b16 %v1667
    %v1750 = vunpack.c.l.b16 %v1668
    %v1751 = vunpack.c.h.b16 %v1668
    %v1752 = vunpack.c.l.b16 %v1669
    %v1753 = vunpack.c.h.b16 %v1669
    %v1754 = vunpack.c.l.b16 %v1670
    %v1755 = vunpack.c.h.b16 %v1670
    %v1756 = vunpack.c.l.b16 %v1671
    %v1757 = vunpack.c.h.b16 %v1671
    %v1758 = vunpack.c.l.b16 %v1672
    %v1759 = vunpack.c.h.b16 %v1672
    %v1760 = vunpack.c.l.b16 %v1673
    %v1761 = vunpack.c.h.b16 %v1673
    %v1762 = vunpack.c.l.b16 %v1674
    %v1763 = vunpack.c.h.b16 %v1674
    %v1764 = vunpack.c.l.b16 %v1675
    %v1765 = vunpack.c.h.b16 %v1675
    %v1766 = vunpack.c.l.b16 %v1676
    %v1767 = vunpack.c.h.b16 %v1676
    %v1768 = vunpack.c.l.b16 %v1677
    %v1769 = vunpack.c.h.b16 %v1677
    %v1770 = vunpack.c.l.b16 %v1678
    %v1771 = vunpack.c.h.b16 %v1678
    %v1772 = vunpack.c.l.b16 %v1679
    %v1773 = vunpack.c.h.b16 %v1679
    %v1774 = vunpack.c.l.b16 %v1680
    %v1775 = vunpack.c.h.b16 %v1680
    %v1776 = vunpack.c.l.b16 %v1681
    %v1777 = vunpack.c.h.b16 %v1681
    %v1778 = vpack.c.b16 %v1716, %v1714
    %v1779 = vpack.c.b16 %v1717, %v1715
    %v1780 = vpack.c.b16 %v1720, %v1718
    %v1781 = vpack.c.b16 %v1721, %v1719
    %v1782 = vpack.c.b16 %v1724, %v1722
    %v1783 = vpack.c.b16 %v1725, %v1723
    %v1784 = vpack.c.b16 %v1728, %v1726
    %v1785 = vpack.c.b16 %v1729, %v1727
    %v1786 = vpack.c.b16 %v1732, %v1730
    %v1787 = vpack.c.b16 %v1733, %v1731
    %v1788 = vpack.c.b16 %v1736, %v1734
    %v1789 = vpack.c.b16 %v1737, %v1735
    %v1790 = vpack.c.b16 %v1740, %v1738
    %v1791 = vpack.c.b16 %v1741, %v1739
    %v1792 = vpack.c.b16 %v1744, %v1742
    %v1793 = vpack.c.b16 %v1745, %v1743
    %v1794 = vpack.c.b16 %v1748, %v1746
    %v1795 = vpack.c.b16 %v1749, %v1747
    %v1796 = vpack.c.b16 %v1752, %v1750
    %v1797 = vpack.c.b16 %v1753, %v1751
    %v1798 = vpack.c.b16 %v1756, %v1754
    %v1799 = vpack.c.b16 %v1757, %v1755
    %v1800 = vpack.c.b16 %v1760, %v1758
    %v1801 = vpack.c.b16 %v1761, %v1759
    %v1802 = vpack.c.b16 %v1764, %v1762
    %v1803 = vpack.c.b16 %v1765, %v1763
    %v1804 = vpack.c.b16 %v1768, %v1766
    %v1805 = vpack.c.b16 %v1769, %v1767
    %v1806 = vpack.c.b16 %v1772, %v1770
    %v1807 = vpack.c.b16 %v1773, %v1771
    %v1808 = vpack.c.b16 %v1776, %v1774
    %v1809 = vpack.c.b16 %v1777, %v1775
    %1842 = vmatprep.subr.bf16.mxu0 %v1779
    %1843 = vmatpush1.bf16.msra.mxu0 %v1778
    %1844 = vmatprep.subr.bf16.mxu0 %v1781
    %1845 = vmatpush1.bf16.msra.mxu0 %v1780
    %1846 = vmatprep.subr.bf16.mxu0 %v1783
    %1847 = vmatpush1.bf16.msra.mxu0 %v1782
    %1848 = vmatprep.subr.bf16.mxu0 %v1785
    %1849 = vmatpush1.bf16.msra.mxu0 %v1784
    %1850 = vmatprep.subr.bf16.mxu0 %v1787
    %1851 = vmatpush1.bf16.msra.mxu0 %v1786
    %1852 = vmatprep.subr.bf16.mxu0 %v1789
    %1853 = vmatpush1.bf16.msra.mxu0 %v1788
    %1854 = vmatprep.subr.bf16.mxu0 %v1791
    %1855 = vmatpush1.bf16.msra.mxu0 %v1790
    %1856 = vmatprep.subr.bf16.mxu0 %v1793
    %1857 = vmatpush1.bf16.msra.mxu0 %v1792
    %1858 = vmatprep.subr.bf16.mxu0 %v1795
    %1859 = vmatpush1.bf16.msra.mxu0 %v1794
    %1860 = vmatprep.subr.bf16.mxu0 %v1797
    %1861 = vmatpush1.bf16.msra.mxu0 %v1796
    %1862 = vmatprep.subr.bf16.mxu0 %v1799
    %1863 = vmatpush1.bf16.msra.mxu0 %v1798
    %1864 = vmatprep.subr.bf16.mxu0 %v1801
    %1865 = vmatpush1.bf16.msra.mxu0 %v1800
    %1866 = vmatprep.subr.bf16.mxu0 %v1803
    %1867 = vmatpush1.bf16.msra.mxu0 %v1802
    %1868 = vmatprep.subr.bf16.mxu0 %v1805
    %1869 = vmatpush1.bf16.msra.mxu0 %v1804
    %1870 = vmatprep.subr.bf16.mxu0 %v1807
    %1871 = vmatpush1.bf16.msra.mxu0 %v1806
    %1872 = vmatprep.subr.bf16.mxu0 %v1809
    %1873 = vmatpush1.bf16.msra.mxu0 %v1808
    %1874 = vmatprep.mubr.bf16.mxu0 %v1649
    %1875 = vmatmul.mubr.bf16.gmra.mrb[0].mxu0 %v1648
    %v1876 = vpop.f32.mrb[0].mxu0
    %v1877 = vadd.f32 0.0, %v1876
    %v1878 = vpop.f32.mrb[0].mxu0
    %v1879 = vadd.f32 0.0, %v1878
    %v1880 = vpop.f32.mrb[0].mxu0
    %v1881 = vpop.f32.mrb[0].mxu0
    %1882 = vdwg.mxu0
    %v1883 = vadd.f32 %v1646, %v1877
    %v1884 = vadd.f32 %v1647, %v1879
    %v1885 = vtanh.pop %v1883
    %v1886 = vtanh.pop %v1884
    %1887 = vst [vmem:[%s1645] sm:$0xff] %v1885
    %1888 = vst [vmem:[%s1645 + $0x8] sm:$0xff] %v1886
    %s1889 = smul.u32 6, 2
    %s1890 = smul.addr %s1889, 8
    %s1891 = scalar_lea.vmem [#allocation2], %s1890
    %v1892 = vld [vmem:[%s1891] sm:$0xff]
    %v1893 = vld [vmem:[%s1891 + $0x8] sm:$0xff]
    %v1894 = vpack.c.bf16 %v1885, %v1885
    %v1895 = vpack.c.bf16 %v1886, %v1886
    %v1896 = vld [vmem:[#allocation6] sm:$0xff]
    %v1897 = vld [vmem:[#allocation6 + $0x8] sm:$0xff]
    %v1898 = vld [vmem:[#allocation6 + $0x10] sm:$0xff]
    %v1899 = vld [vmem:[#allocation6 + $0x18] sm:$0xff]
    %v1900 = vld [vmem:[#allocation6 + $0x20] sm:$0xff]
    %v1901 = vld [vmem:[#allocation6 + $0x28] sm:$0xff]
    %v1902 = vld [vmem:[#allocation6 + $0x30] sm:$0xff]
    %v1903 = vld [vmem:[#allocation6 + $0x38] sm:$0xff]
    %v1904 = vld [vmem:[#allocation6 + $0x40] sm:$0xff]
    %v1905 = vld [vmem:[#allocation6 + $0x48] sm:$0xff]
    %v1906 = vld [vmem:[#allocation6 + $0x50] sm:$0xff]
    %v1907 = vld [vmem:[#allocation6 + $0x58] sm:$0xff]
    %v1908 = vld [vmem:[#allocation6 + $0x60] sm:$0xff]
    %v1909 = vld [vmem:[#allocation6 + $0x68] sm:$0xff]
    %v1910 = vld [vmem:[#allocation6 + $0x70] sm:$0xff]
    %v1911 = vld [vmem:[#allocation6 + $0x78] sm:$0xff]
    %v1912 = vld [vmem:[#allocation6 + $0x80] sm:$0xff]
    %v1913 = vld [vmem:[#allocation6 + $0x88] sm:$0xff]
    %v1914 = vld [vmem:[#allocation6 + $0x90] sm:$0xff]
    %v1915 = vld [vmem:[#allocation6 + $0x98] sm:$0xff]
    %v1916 = vld [vmem:[#allocation6 + $0xa0] sm:$0xff]
    %v1917 = vld [vmem:[#allocation6 + $0xa8] sm:$0xff]
    %v1918 = vld [vmem:[#allocation6 + $0xb0] sm:$0xff]
    %v1919 = vld [vmem:[#allocation6 + $0xb8] sm:$0xff]
    %v1920 = vld [vmem:[#allocation6 + $0xc0] sm:$0xff]
    %v1921 = vld [vmem:[#allocation6 + $0xc8] sm:$0xff]
    %v1922 = vld [vmem:[#allocation6 + $0xd0] sm:$0xff]
    %v1923 = vld [vmem:[#allocation6 + $0xd8] sm:$0xff]
    %v1924 = vld [vmem:[#allocation6 + $0xe0] sm:$0xff]
    %v1925 = vld [vmem:[#allocation6 + $0xe8] sm:$0xff]
    %v1926 = vld [vmem:[#allocation6 + $0xf0] sm:$0xff]
    %v1927 = vld [vmem:[#allocation6 + $0xf8] sm:$0xff]
    %v1960 = vunpack.c.l.b16 %v1896
    %v1961 = vunpack.c.h.b16 %v1896
    %v1962 = vunpack.c.l.b16 %v1897
    %v1963 = vunpack.c.h.b16 %v1897
    %v1964 = vunpack.c.l.b16 %v1898
    %v1965 = vunpack.c.h.b16 %v1898
    %v1966 = vunpack.c.l.b16 %v1899
    %v1967 = vunpack.c.h.b16 %v1899
    %v1968 = vunpack.c.l.b16 %v1900
    %v1969 = vunpack.c.h.b16 %v1900
    %v1970 = vunpack.c.l.b16 %v1901
    %v1971 = vunpack.c.h.b16 %v1901
    %v1972 = vunpack.c.l.b16 %v1902
    %v1973 = vunpack.c.h.b16 %v1902
    %v1974 = vunpack.c.l.b16 %v1903
    %v1975 = vunpack.c.h.b16 %v1903
    %v1976 = vunpack.c.l.b16 %v1904
    %v1977 = vunpack.c.h.b16 %v1904
    %v1978 = vunpack.c.l.b16 %v1905
    %v1979 = vunpack.c.h.b16 %v1905
    %v1980 = vunpack.c.l.b16 %v1906
    %v1981 = vunpack.c.h.b16 %v1906
    %v1982 = vunpack.c.l.b16 %v1907
    %v1983 = vunpack.c.h.b16 %v1907
    %v1984 = vunpack.c.l.b16 %v1908
    %v1985 = vunpack.c.h.b16 %v1908
    %v1986 = vunpack.c.l.b16 %v1909
    %v1987 = vunpack.c.h.b16 %v1909
    %v1988 = vunpack.c.l.b16 %v1910
    %v1989 = vunpack.c.h.b16 %v1910
    %v1990 = vunpack.c.l.b16 %v1911
    %v1991 = vunpack.c.h.b16 %v1911
    %v1992 = vunpack.c.l.b16 %v1912
    %v1993 = vunpack.c.h.b16 %v1912
    %v1994 = vunpack.c.l.b16 %v1913
    %v1995 = vunpack.c.h.b16 %v1913
    %v1996 = vunpack.c.l.b16 %v1914
    %v1997 = vunpack.c.h.b16 %v1914
    %v1998 = vunpack.c.l.b16 %v1915
    %v1999 = vunpack.c.h.b16 %v1915
    %v2000 = vunpack.c.l.b16 %v1916
    %v2001 = vunpack.c.h.b16 %v1916
    %v2002 = vunpack.c.l.b16 %v1917
    %v2003 = vunpack.c.h.b16 %v1917
    %v2004 = vunpack.c.l.b16 %v1918
    %v2005 = vunpack.c.h.b16 %v1918
    %v2006 = vunpack.c.l.b16 %v1919
    %v2007 = vunpack.c.h.b16 %v1919
    %v2008 = vunpack.c.l.b16 %v1920
    %v2009 = vunpack.c.h.b16 %v1920
    %v2010 = vunpack.c.l.b16 %v1921
    %v2011 = vunpack.c.h.b16 %v1921
    %v2012 = vunpack.c.l.b16 %v1922
    %v2013 = vunpack.c.h.b16 %v1922
    %v2014 = vunpack.c.l.b16 %v1923
    %v2015 = vunpack.c.h.b16 %v1923
    %v2016 = vunpack.c.l.b16 %v1924
    %v2017 = vunpack.c.h.b16 %v1924
    %v2018 = vunpack.c.l.b16 %v1925
    %v2019 = vunpack.c.h.b16 %v1925
    %v2020 = vunpack.c.l.b16 %v1926
    %v2021 = vunpack.c.h.b16 %v1926
    %v2022 = vunpack.c.l.b16 %v1927
    %v2023 = vunpack.c.h.b16 %v1927
    %v2024 = vpack.c.b16 %v1962, %v1960
    %v2025 = vpack.c.b16 %v1963, %v1961
    %v2026 = vpack.c.b16 %v1966, %v1964
    %v2027 = vpack.c.b16 %v1967, %v1965
    %v2028 = vpack.c.b16 %v1970, %v1968
    %v2029 = vpack.c.b16 %v1971, %v1969
    %v2030 = vpack.c.b16 %v1974, %v1972
    %v2031 = vpack.c.b16 %v1975, %v1973
    %v2032 = vpack.c.b16 %v1978, %v1976
    %v2033 = vpack.c.b16 %v1979, %v1977
    %v2034 = vpack.c.b16 %v1982, %v1980
    %v2035 = vpack.c.b16 %v1983, %v1981
    %v2036 = vpack.c.b16 %v1986, %v1984
    %v2037 = vpack.c.b16 %v1987, %v1985
    %v2038 = vpack.c.b16 %v1990, %v1988
    %v2039 = vpack.c.b16 %v1991, %v1989
    %v2040 = vpack.c.b16 %v1994, %v1992
    %v2041 = vpack.c.b16 %v1995, %v1993
    %v2042 = vpack.c.b16 %v1998, %v1996
    %v2043 = vpack.c.b16 %v1999, %v1997
    %v2044 = vpack.c.b16 %v2002, %v2000
    %v2045 = vpack.c.b16 %v2003, %v2001
    %v2046 = vpack.c.b16 %v2006, %v2004
    %v2047 = vpack.c.b16 %v2007, %v2005
    %v2048 = vpack.c.b16 %v2010, %v2008
    %v2049 = vpack.c.b16 %v2011, %v2009
    %v2050 = vpack.c.b16 %v2014, %v2012
    %v2051 = vpack.c.b16 %v2015, %v2013
    %v2052 = vpack.c.b16 %v2018, %v2016
    %v2053 = vpack.c.b16 %v2019, %v2017
    %v2054 = vpack.c.b16 %v2022, %v2020
    %v2055 = vpack.c.b16 %v2023, %v2021
    %2088 = vmatprep.subr.bf16.mxu0 %v2025
    %2089 = vmatpush1.bf16.msra.mxu0 %v2024
    %2090 = vmatprep.subr.bf16.mxu0 %v2027
    %2091 = vmatpush1.bf16.msra.mxu0 %v2026
    %2092 = vmatprep.subr.bf16.mxu0 %v2029
    %2093 = vmatpush1.bf16.msra.mxu0 %v2028
    %2094 = vmatprep.subr.bf16.mxu0 %v2031
    %2095 = vmatpush1.bf16.msra.mxu0 %v2030
    %2096 = vmatprep.subr.bf16.mxu0 %v2033
    %2097 = vmatpush1.bf16.msra.mxu0 %v2032
    %2098 = vmatprep.subr.bf16.mxu0 %v2035
    %2099 = vmatpush1.bf16.msra.mxu0 %v2034
    %2100 = vmatprep.subr.bf16.mxu0 %v2037
    %2101 = vmatpush1.bf16.msra.mxu0 %v2036
    %2102 = vmatprep.subr.bf16.mxu0 %v2039
    %2103 = vmatpush1.bf16.msra.mxu0 %v2038
    %2104 = vmatprep.subr.bf16.mxu0 %v2041
    %2105 = vmatpush1.bf16.msra.mxu0 %v2040
    %2106 = vmatprep.subr.bf16.mxu0 %v2043
    %2107 = vmatpush1.bf16.msra.mxu0 %v2042
    %2108 = vmatprep.subr.bf16.mxu0 %v2045
    %2109 = vmatpush1.bf16.msra.mxu0 %v2044
    %2110 = vmatprep.subr.bf16.mxu0 %v2047
    %2111 = vmatpush1.bf16.msra.mxu0 %v2046
    %2112 = vmatprep.subr.bf16.mxu0 %v2049
    %2113 = vmatpush1.bf16.msra.mxu0 %v2048
    %2114 = vmatprep.subr.bf16.mxu0 %v2051
    %2115 = vmatpush1.bf16.msra.mxu0 %v2050
    %2116 = vmatprep.subr.bf16.mxu0 %v2053
    %2117 = vmatpush1.bf16.msra.mxu0 %v2052
    %2118 = vmatprep.subr.bf16.mxu0 %v2055
    %2119 = vmatpush1.bf16.msra.mxu0 %v2054
    %2120 = vmatprep.mubr.bf16.mxu0 %v1895
    %2121 = vmatmul.mubr.bf16.gmra.mrb[0].mxu0 %v1894
    %v2122 = vpop.f32.mrb[0].mxu0
    %v2123 = vadd.f32 0.0, %v2122
    %v2124 = vpop.f32.mrb[0].mxu0
    %v2125 = vadd.f32 0.0, %v2124
    %v2126 = vpop.f32.mrb[0].mxu0
    %v2127 = vpop.f32.mrb[0].mxu0
    %2128 = vdwg.mxu0
    %v2129 = vadd.f32 %v1892, %v2123
    %v2130 = vadd.f32 %v1893, %v2125
    %v2131 = vtanh.pop %v2129
    %v2132 = vtanh.pop %v2130
    %2133 = vst [vmem:[%s1891] sm:$0xff] %v2131
    %2134 = vst [vmem:[%s1891 + $0x8] sm:$0xff] %v2132
    %s2135 = smul.u32 7, 2
    %s2136 = smul.addr %s2135, 8
    %s2137 = scalar_lea.vmem [#allocation2], %s2136
    %v2138 = vld [vmem:[%s2137] sm:$0xff]
    %v2139 = vld [vmem:[%s2137 + $0x8] sm:$0xff]
    %v2140 = vpack.c.bf16 %v2131, %v2131
    %v2141 = vpack.c.bf16 %v2132, %v2132
    %v2142 = vld [vmem:[#allocation6] sm:$0xff]
    %v2143 = vld [vmem:[#allocation6 + $0x8] sm:$0xff]
    %v2144 = vld [vmem:[#allocation6 + $0x10] sm:$0xff]
    %v2145 = vld [vmem:[#allocation6 + $0x18] sm:$0xff]
    %v2146 = vld [vmem:[#allocation6 + $0x20] sm:$0xff]
    %v2147 = vld [vmem:[#allocation6 + $0x28] sm:$0xff]
    %v2148 = vld [vmem:[#allocation6 + $0x30] sm:$0xff]
    %v2149 = vld [vmem:[#allocation6 + $0x38] sm:$0xff]
    %v2150 = vld [vmem:[#allocation6 + $0x40] sm:$0xff]
    %v2151 = vld [vmem:[#allocation6 + $0x48] sm:$0xff]
    %v2152 = vld [vmem:[#allocation6 + $0x50] sm:$0xff]
    %v2153 = vld [vmem:[#allocation6 + $0x58] sm:$0xff]
    %v2154 = vld [vmem:[#allocation6 + $0x60] sm:$0xff]
    %v2155 = vld [vmem:[#allocation6 + $0x68] sm:$0xff]
    %v2156 = vld [vmem:[#allocation6 + $0x70] sm:$0xff]
    %v2157 = vld [vmem:[#allocation6 + $0x78] sm:$0xff]
    %v2158 = vld [vmem:[#allocation6 + $0x80] sm:$0xff]
    %v2159 = vld [vmem:[#allocation6 + $0x88] sm:$0xff]
    %v2160 = vld [vmem:[#allocation6 + $0x90] sm:$0xff]
    %v2161 = vld [vmem:[#allocation6 + $0x98] sm:$0xff]
    %v2162 = vld [vmem:[#allocation6 + $0xa0] sm:$0xff]
    %v2163 = vld [vmem:[#allocation6 + $0xa8] sm:$0xff]
    %v2164 = vld [vmem:[#allocation6 + $0xb0] sm:$0xff]
    %v2165 = vld [vmem:[#allocation6 + $0xb8] sm:$0xff]
    %v2166 = vld [vmem:[#allocation6 + $0xc0] sm:$0xff]
    %v2167 = vld [vmem:[#allocation6 + $0xc8] sm:$0xff]
    %v2168 = vld [vmem:[#allocation6 + $0xd0] sm:$0xff]
    %v2169 = vld [vmem:[#allocation6 + $0xd8] sm:$0xff]
    %v2170 = vld [vmem:[#allocation6 + $0xe0] sm:$0xff]
    %v2171 = vld [vmem:[#allocation6 + $0xe8] sm:$0xff]
    %v2172 = vld [vmem:[#allocation6 + $0xf0] sm:$0xff]
    %v2173 = vld [vmem:[#allocation6 + $0xf8] sm:$0xff]
    %v2206 = vunpack.c.l.b16 %v2142
    %v2207 = vunpack.c.h.b16 %v2142
    %v2208 = vunpack.c.l.b16 %v2143
    %v2209 = vunpack.c.h.b16 %v2143
    %v2210 = vunpack.c.l.b16 %v2144
    %v2211 = vunpack.c.h.b16 %v2144
    %v2212 = vunpack.c.l.b16 %v2145
    %v2213 = vunpack.c.h.b16 %v2145
    %v2214 = vunpack.c.l.b16 %v2146
    %v2215 = vunpack.c.h.b16 %v2146
    %v2216 = vunpack.c.l.b16 %v2147
    %v2217 = vunpack.c.h.b16 %v2147
    %v2218 = vunpack.c.l.b16 %v2148
    %v2219 = vunpack.c.h.b16 %v2148
    %v2220 = vunpack.c.l.b16 %v2149
    %v2221 = vunpack.c.h.b16 %v2149
    %v2222 = vunpack.c.l.b16 %v2150
    %v2223 = vunpack.c.h.b16 %v2150
    %v2224 = vunpack.c.l.b16 %v2151
    %v2225 = vunpack.c.h.b16 %v2151
    %v2226 = vunpack.c.l.b16 %v2152
    %v2227 = vunpack.c.h.b16 %v2152
    %v2228 = vunpack.c.l.b16 %v2153
    %v2229 = vunpack.c.h.b16 %v2153
    %v2230 = vunpack.c.l.b16 %v2154
    %v2231 = vunpack.c.h.b16 %v2154
    %v2232 = vunpack.c.l.b16 %v2155
    %v2233 = vunpack.c.h.b16 %v2155
    %v2234 = vunpack.c.l.b16 %v2156
    %v2235 = vunpack.c.h.b16 %v2156
    %v2236 = vunpack.c.l.b16 %v2157
    %v2237 = vunpack.c.h.b16 %v2157
    %v2238 = vunpack.c.l.b16 %v2158
    %v2239 = vunpack.c.h.b16 %v2158
    %v2240 = vunpack.c.l.b16 %v2159
    %v2241 = vunpack.c.h.b16 %v2159
    %v2242 = vunpack.c.l.b16 %v2160
    %v2243 = vunpack.c.h.b16 %v2160
    %v2244 = vunpack.c.l.b16 %v2161
    %v2245 = vunpack.c.h.b16 %v2161
    %v2246 = vunpack.c.l.b16 %v2162
    %v2247 = vunpack.c.h.b16 %v2162
    %v2248 = vunpack.c.l.b16 %v2163
    %v2249 = vunpack.c.h.b16 %v2163
    %v2250 = vunpack.c.l.b16 %v2164
    %v2251 = vunpack.c.h.b16 %v2164
    %v2252 = vunpack.c.l.b16 %v2165
    %v2253 = vunpack.c.h.b16 %v2165
    %v2254 = vunpack.c.l.b16 %v2166
    %v2255 = vunpack.c.h.b16 %v2166
    %v2256 = vunpack.c.l.b16 %v2167
    %v2257 = vunpack.c.h.b16 %v2167
    %v2258 = vunpack.c.l.b16 %v2168
    %v2259 = vunpack.c.h.b16 %v2168
    %v2260 = vunpack.c.l.b16 %v2169
    %v2261 = vunpack.c.h.b16 %v2169
    %v2262 = vunpack.c.l.b16 %v2170
    %v2263 = vunpack.c.h.b16 %v2170
    %v2264 = vunpack.c.l.b16 %v2171
    %v2265 = vunpack.c.h.b16 %v2171
    %v2266 = vunpack.c.l.b16 %v2172
    %v2267 = vunpack.c.h.b16 %v2172
    %v2268 = vunpack.c.l.b16 %v2173
    %v2269 = vunpack.c.h.b16 %v2173
    %v2270 = vpack.c.b16 %v2208, %v2206
    %v2271 = vpack.c.b16 %v2209, %v2207
    %v2272 = vpack.c.b16 %v2212, %v2210
    %v2273 = vpack.c.b16 %v2213, %v2211
    %v2274 = vpack.c.b16 %v2216, %v2214
    %v2275 = vpack.c.b16 %v2217, %v2215
    %v2276 = vpack.c.b16 %v2220, %v2218
    %v2277 = vpack.c.b16 %v2221, %v2219
    %v2278 = vpack.c.b16 %v2224, %v2222
    %v2279 = vpack.c.b16 %v2225, %v2223
    %v2280 = vpack.c.b16 %v2228, %v2226
    %v2281 = vpack.c.b16 %v2229, %v2227
    %v2282 = vpack.c.b16 %v2232, %v2230
    %v2283 = vpack.c.b16 %v2233, %v2231
    %v2284 = vpack.c.b16 %v2236, %v2234
    %v2285 = vpack.c.b16 %v2237, %v2235
    %v2286 = vpack.c.b16 %v2240, %v2238
    %v2287 = vpack.c.b16 %v2241, %v2239
    %v2288 = vpack.c.b16 %v2244, %v2242
    %v2289 = vpack.c.b16 %v2245, %v2243
    %v2290 = vpack.c.b16 %v2248, %v2246
    %v2291 = vpack.c.b16 %v2249, %v2247
    %v2292 = vpack.c.b16 %v2252, %v2250
    %v2293 = vpack.c.b16 %v2253, %v2251
    %v2294 = vpack.c.b16 %v2256, %v2254
    %v2295 = vpack.c.b16 %v2257, %v2255
    %v2296 = vpack.c.b16 %v2260, %v2258
    %v2297 = vpack.c.b16 %v2261, %v2259
    %v2298 = vpack.c.b16 %v2264, %v2262
    %v2299 = vpack.c.b16 %v2265, %v2263
    %v2300 = vpack.c.b16 %v2268, %v2266
    %v2301 = vpack.c.b16 %v2269, %v2267
    %2334 = vmatprep.subr.bf16.mxu0 %v2271
    %2335 = vmatpush1.bf16.msra.mxu0 %v2270
    %2336 = vmatprep.subr.bf16.mxu0 %v2273
    %2337 = vmatpush1.bf16.msra.mxu0 %v2272
    %2338 = vmatprep.subr.bf16.mxu0 %v2275
    %2339 = vmatpush1.bf16.msra.mxu0 %v2274
    %2340 = vmatprep.subr.bf16.mxu0 %v2277
    %2341 = vmatpush1.bf16.msra.mxu0 %v2276
    %2342 = vmatprep.subr.bf16.mxu0 %v2279
    %2343 = vmatpush1.bf16.msra.mxu0 %v2278
    %2344 = vmatprep.subr.bf16.mxu0 %v2281
    %2345 = vmatpush1.bf16.msra.mxu0 %v2280
    %2346 = vmatprep.subr.bf16.mxu0 %v2283
    %2347 = vmatpush1.bf16.msra.mxu0 %v2282
    %2348 = vmatprep.subr.bf16.mxu0 %v2285
    %2349 = vmatpush1.bf16.msra.mxu0 %v2284
    %2350 = vmatprep.subr.bf16.mxu0 %v2287
    %2351 = vmatpush1.bf16.msra.mxu0 %v2286
    %2352 = vmatprep.subr.bf16.mxu0 %v2289
    %2353 = vmatpush1.bf16.msra.mxu0 %v2288
    %2354 = vmatprep.subr.bf16.mxu0 %v2291
    %2355 = vmatpush1.bf16.msra.mxu0 %v2290
    %2356 = vmatprep.subr.bf16.mxu0 %v2293
    %2357 = vmatpush1.bf16.msra.mxu0 %v2292
    %2358 = vmatprep.subr.bf16.mxu0 %v2295
    %2359 = vmatpush1.bf16.msra.mxu0 %v2294
    %2360 = vmatprep.subr.bf16.mxu0 %v2297
    %2361 = vmatpush1.bf16.msra.mxu0 %v2296
    %2362 = vmatprep.subr.bf16.mxu0 %v2299
    %2363 = vmatpush1.bf16.msra.mxu0 %v2298
    %2364 = vmatprep.subr.bf16.mxu0 %v2301
    %2365 = vmatpush1.bf16.msra.mxu0 %v2300
    %2366 = vmatprep.mubr.bf16.mxu0 %v2141
    %2367 = vmatmul.mubr.bf16.gmra.mrb[0].mxu0 %v2140
    %v2368 = vpop.f32.mrb[0].mxu0
    %v2369 = vadd.f32 0.0, %v2368
    %v2370 = vpop.f32.mrb[0].mxu0
    %v2371 = vadd.f32 0.0, %v2370
    %v2372 = vpop.f32.mrb[0].mxu0
    %v2373 = vpop.f32.mrb[0].mxu0
    %2374 = vdwg.mxu0
    %v2375 = vadd.f32 %v2138, %v2369
    %v2376 = vadd.f32 %v2139, %v2371
    %v2377 = vtanh.pop %v2375
    %v2378 = vtanh.pop %v2376
    %2379 = vst [vmem:[%s2137] sm:$0xff] %v2377
    %2380 = vst [vmem:[%s2137 + $0x8] sm:$0xff] %v2378
    %2381 = vst [vmem:[#allocation10] sm:$0xff] %v2377
    %2382 = vst [vmem:[#allocation10 + $0x8] sm:$0xff] %v2378
    %v2383 = vld [vmem:[#allocation2] sm:$0xff]
    %v2384 = vld [vmem:[#allocation2 + $0x8] sm:$0xff]
    %v2385 = vld [vmem:[#allocation2 + $0x10] sm:$0xff]
    %v2386 = vld [vmem:[#allocation2 + $0x18] sm:$0xff]
    %v2387 = vld [vmem:[#allocation2 + $0x20] sm:$0xff]
    %v2388 = vld [vmem:[#allocation2 + $0x28] sm:$0xff]
    %v2389 = vld [vmem:[#allocation2 + $0x30] sm:$0xff]
    %v2390 = vld [vmem:[#allocation2 + $0x38] sm:$0xff]
    %v2391 = vld [vmem:[#allocation2 + $0x40] sm:$0xff]
    %v2392 = vld [vmem:[#allocation2 + $0x48] sm:$0xff]
    %v2393 = vld [vmem:[#allocation2 + $0x50] sm:$0xff]
    %v2394 = vld [vmem:[#allocation2 + $0x58] sm:$0xff]
    %v2395 = vld [vmem:[#allocation2 + $0x60] sm:$0xff]
    %v2396 = vld [vmem:[#allocation2 + $0x68] sm:$0xff]
    %v2397 = vld [vmem:[#allocation2 + $0x70] sm:$0xff]
    %v2398 = vld [vmem:[#allocation2 + $0x78] sm:$0xff]
    %v2399 = vpack.c.bf16 %v2385, %v2383
    %v2400 = vpack.c.bf16 %v2386, %v2384
    %v2401 = vpack.c.bf16 %v2389, %v2387
    %v2402 = vpack.c.bf16 %v2390, %v2388
    %v2403 = vpack.c.bf16 %v2393, %v2391
    %v2404 = vpack.c.bf16 %v2394, %v2392
    %v2405 = vpack.c.bf16 %v2397, %v2395
    %v2406 = vpack.c.bf16 %v2398, %v2396
    %v2407 = vld [vmem:[#allocation8] sm:$0xf]
    %v2408 = vld [vmem:[#allocation8 + $0x4] sm:$0xf]
    %v2409 = vld [vmem:[#allocation8 + $0x8] sm:$0xf]
    %v2410 = vld [vmem:[#allocation8 + $0xc] sm:$0xf]
    %v2411 = vld [vmem:[#allocation8 + $0x10] sm:$0xf]
    %v2412 = vld [vmem:[#allocation8 + $0x14] sm:$0xf]
    %v2413 = vld [vmem:[#allocation8 + $0x18] sm:$0xf]
    %v2414 = vld [vmem:[#allocation8 + $0x1c] sm:$0xf]
    %v2415 = vld [vmem:[#allocation8 + $0x20] sm:$0xf]
    %v2416 = vld [vmem:[#allocation8 + $0x24] sm:$0xf]
    %v2417 = vld [vmem:[#allocation8 + $0x28] sm:$0xf]
    %v2418 = vld [vmem:[#allocation8 + $0x2c] sm:$0xf]
    %v2419 = vld [vmem:[#allocation8 + $0x30] sm:$0xf]
    %v2420 = vld [vmem:[#allocation8 + $0x34] sm:$0xf]
    %v2421 = vld [vmem:[#allocation8 + $0x38] sm:$0xf]
    %v2422 = vld [vmem:[#allocation8 + $0x3c] sm:$0xf]
    %v2423 = vld [vmem:[#allocation8 + $0x40] sm:$0xf]
    %v2424 = vld [vmem:[#allocation8 + $0x44] sm:$0xf]
    %v2425 = vld [vmem:[#allocation8 + $0x48] sm:$0xf]
    %v2426 = vld [vmem:[#allocation8 + $0x4c] sm:$0xf]
    %v2427 = vld [vmem:[#allocation8 + $0x50] sm:$0xf]
    %v2428 = vld [vmem:[#allocation8 + $0x54] sm:$0xf]
    %v2429 = vld [vmem:[#allocation8 + $0x58] sm:$0xf]
    %v2430 = vld [vmem:[#allocation8 + $0x5c] sm:$0xf]
    %v2431 = vld [vmem:[#allocation8 + $0x60] sm:$0xf]
    %v2432 = vld [vmem:[#allocation8 + $0x64] sm:$0xf]
    %v2433 = vld [vmem:[#allocation8 + $0x68] sm:$0xf]
    %v2434 = vld [vmem:[#allocation8 + $0x6c] sm:$0xf]
    %v2435 = vld [vmem:[#allocation8 + $0x70] sm:$0xf]
    %v2436 = vld [vmem:[#allocation8 + $0x74] sm:$0xf]
    %v2437 = vld [vmem:[#allocation8 + $0x78] sm:$0xf]
    %v2438 = vld [vmem:[#allocation8 + $0x7c] sm:$0xf]
    %v2439 = vld [vmem:[%s6] sm:$0x1]
    %v2441 = vlaneseq
    %v2442 = vshrl.u32 %v2441, 7
    %v2443 = vsub.s32 0, %v2442
    %v2444 = vrot.slane %v2439, %v2443
    %v2478 = vunpack.c.l.b16 %v2407
    %v2479 = vunpack.c.l.b16 %v2408
    %v2480 = vunpack.c.l.b16 %v2409
    %v2481 = vunpack.c.l.b16 %v2410
    %v2482 = vunpack.c.l.b16 %v2411
    %v2483 = vunpack.c.l.b16 %v2412
    %v2484 = vunpack.c.l.b16 %v2413
    %v2485 = vunpack.c.l.b16 %v2414
    %v2486 = vunpack.c.l.b16 %v2415
    %v2487 = vunpack.c.l.b16 %v2416
    %v2488 = vunpack.c.l.b16 %v2417
    %v2489 = vunpack.c.l.b16 %v2418
    %v2490 = vunpack.c.l.b16 %v2419
    %v2491 = vunpack.c.l.b16 %v2420
    %v2492 = vunpack.c.l.b16 %v2421
    %v2493 = vunpack.c.l.b16 %v2422
    %v2494 = vunpack.c.l.b16 %v2423
    %v2495 = vunpack.c.l.b16 %v2424
    %v2496 = vunpack.c.l.b16 %v2425
    %v2497 = vunpack.c.l.b16 %v2426
    %v2498 = vunpack.c.l.b16 %v2427
    %v2499 = vunpack.c.l.b16 %v2428
    %v2500 = vunpack.c.l.b16 %v2429
    %v2501 = vunpack.c.l.b16 %v2430
    %v2502 = vunpack.c.l.b16 %v2431
    %v2503 = vunpack.c.l.b16 %v2432
    %v2504 = vunpack.c.l.b16 %v2433
    %v2505 = vunpack.c.l.b16 %v2434
    %v2506 = vunpack.c.l.b16 %v2435
    %v2507 = vunpack.c.l.b16 %v2436
    %v2508 = vunpack.c.l.b16 %v2437
    %v2509 = vunpack.c.l.b16 %v2438
    %v2510 = vpack.c.b16 %v2479, %v2478
    %v2511 = vpack.c.b16 %v2481, %v2480
    %v2512 = vpack.c.b16 %v2483, %v2482
    %v2513 = vpack.c.b16 %v2485, %v2484
    %v2514 = vpack.c.b16 %v2487, %v2486
    %v2515 = vpack.c.b16 %v2489, %v2488
    %v2516 = vpack.c.b16 %v2491, %v2490
    %v2517 = vpack.c.b16 %v2493, %v2492
    %v2518 = vpack.c.b16 %v2495, %v2494
    %v2519 = vpack.c.b16 %v2497, %v2496
    %v2520 = vpack.c.b16 %v2499, %v2498
    %v2521 = vpack.c.b16 %v2501, %v2500
    %v2522 = vpack.c.b16 %v2503, %v2502
    %v2523 = vpack.c.b16 %v2505, %v2504
    %v2524 = vpack.c.b16 %v2507, %v2506
    %v2525 = vpack.c.b16 %v2509, %v2508
    %2542 = vmatprep.subr.bf16.mxu0 0
    %2543 = vmatpush1.bf16.msra.mxu0 %v2510
    %2544 = vmatprep.subr.bf16.mxu0 0
    %2545 = vmatpush1.bf16.msra.mxu0 %v2511
    %2546 = vmatprep.subr.bf16.mxu0 0
    %2547 = vmatpush1.bf16.msra.mxu0 %v2512
    %2548 = vmatprep.subr.bf16.mxu0 0
    %2549 = vmatpush1.bf16.msra.mxu0 %v2513
    %2550 = vmatprep.subr.bf16.mxu0 0
    %2551 = vmatpush1.bf16.msra.mxu0 %v2514
    %2552 = vmatprep.subr.bf16.mxu0 0
    %2553 = vmatpush1.bf16.msra.mxu0 %v2515
    %2554 = vmatprep.subr.bf16.mxu0 0
    %2555 = vmatpush1.bf16.msra.mxu0 %v2516
    %2556 = vmatprep.subr.bf16.mxu0 0
    %2557 = vmatpush1.bf16.msra.mxu0 %v2517
    %2558 = vmatprep.subr.bf16.mxu0 0
    %2559 = vmatpush1.bf16.msra.mxu0 %v2518
    %2560 = vmatprep.subr.bf16.mxu0 0
    %2561 = vmatpush1.bf16.msra.mxu0 %v2519
    %2562 = vmatprep.subr.bf16.mxu0 0
    %2563 = vmatpush1.bf16.msra.mxu0 %v2520
    %2564 = vmatprep.subr.bf16.mxu0 0
    %2565 = vmatpush1.bf16.msra.mxu0 %v2521
    %2566 = vmatprep.subr.bf16.mxu0 0
    %2567 = vmatpush1.bf16.msra.mxu0 %v2522
    %2568 = vmatprep.subr.bf16.mxu0 0
    %2569 = vmatpush1.bf16.msra.mxu0 %v2523
    %2570 = vmatprep.subr.bf16.mxu0 0
    %2571 = vmatpush1.bf16.msra.mxu0 %v2524
    %2572 = vmatprep.subr.bf16.mxu0 0
    %2573 = vmatpush1.bf16.msra.mxu0 %v2525
    %2574 = vmatprep.mubr.bf16.mxu0 %v2400
    %2575 = vmatmul.mubr.bf16.gmra.mrb[0].mxu0 %v2399
    %v2576 = vpop.f32.mrb[0].mxu0
    %v2577 = vadd.f32 %v2444, %v2576
    %v2578 = vpop.f32.mrb[0].mxu0
    %v2579 = vpop.f32.mrb[0].mxu0
    %v2580 = vadd.f32 %v2444, %v2579
    %v2581 = vpop.f32.mrb[0].mxu0
    %2582 = vmatprep.mubr.bf16.mxu0 %v2402
    %2583 = vmatmul.mubr.bf16.gmra.mrb[0].mxu0 %v2401
    %v2584 = vpop.f32.mrb[0].mxu0
    %v2585 = vadd.f32 %v2444, %v2584
    %v2586 = vpop.f32.mrb[0].mxu0
    %v2587 = vpop.f32.mrb[0].mxu0
    %v2588 = vadd.f32 %v2444, %v2587
    %v2589 = vpop.f32.mrb[0].mxu0
    %2590 = vmatprep.mubr.bf16.mxu0 %v2404
    %2591 = vmatmul.mubr.bf16.gmra.mrb[0].mxu0 %v2403
    %v2592 = vpop.f32.mrb[0].mxu0
    %v2593 = vadd.f32 %v2444, %v2592
    %v2594 = vpop.f32.mrb[0].mxu0
    %v2595 = vpop.f32.mrb[0].mxu0
    %v2596 = vadd.f32 %v2444, %v2595
    %v2597 = vpop.f32.mrb[0].mxu0
    %2598 = vmatprep.mubr.bf16.mxu0 %v2406
    %2599 = vmatmul.mubr.bf16.gmra.mrb[0].mxu0 %v2405
    %v2600 = vpop.f32.mrb[0].mxu0
    %v2601 = vadd.f32 %v2444, %v2600
    %v2602 = vpop.f32.mrb[0].mxu0
    %v2603 = vpop.f32.mrb[0].mxu0
    %v2604 = vadd.f32 %v2444, %v2603
    %v2605 = vpop.f32.mrb[0].mxu0
    %2606 = vdwg.mxu0
    %2607 = vst [vmem:[#allocation9] sm:$0xff] %v2577
    %2608 = vst [vmem:[#allocation9 + $0x8] sm:$0xff] %v2580
    %2609 = vst [vmem:[#allocation9 + $0x10] sm:$0xff] %v2585
    %2610 = vst [vmem:[#allocation9 + $0x18] sm:$0xff] %v2588
    %2611 = vst [vmem:[#allocation9 + $0x20] sm:$0xff] %v2593
    %2612 = vst [vmem:[#allocation9 + $0x28] sm:$0xff] %v2596
    %2613 = vst [vmem:[#allocation9 + $0x30] sm:$0xff] %v2601
    %2614 = vst [vmem:[#allocation9 + $0x38] sm:$0xff] %v2604
    // Predicated region
    $region42: #{tpu_custom_call.1} parent=1 // pred_check
      _
    $region43: #{tpu_custom_call.1} parent=1 // pred_check_branch
      %2616 = sbr.rel (0) target = $region45
    $region44: #{tpu_custom_call.1} parent=1 // pred_region
      %s2618 = ssub.s32 1024, 1024
      %2619 = vsyncadd [#allocation5], %s2618
      %s2620 = sshll.u32 [#allocation9], 4
      %s2621 = int_to_ptr.vmem [resolvable:$true] %s2620
      %2626 = dma.vmem_to_hbm [thread:$0]  %s2621, 1024, %s7, [#allocation5], 128, 128, 8
    $region45: #{tpu_custom_call.1} parent=1 // pred_fallthru
      _
    // Predicated region
    $region46: #{tpu_custom_call.1} parent=1 // pred_check
      _
    $region47: #{tpu_custom_call.1} parent=1 // pred_check_branch
      %2628 = sbr.rel (0) target = $region49
    $region48: #{tpu_custom_call.1} parent=1 // pred_region
      %s2630 = ssub.s32 256, 256
      %2631 = vsyncadd [#allocation11], %s2630
      %s2633 = sshll.u32 [#allocation10], 4
      %s2634 = int_to_ptr.vmem [resolvable:$true] %s2633
      %2636 = dma.vmem_to_hbm [thread:$0]  %s2634, 256, %s8, [#allocation11]
    $region49: #{tpu_custom_call.1} parent=1 // pred_fallthru
      _
    // Predicated region
    $region50: #{tpu_custom_call.1} parent=1 // pred_check
      _
    $region51: #{tpu_custom_call.1} parent=1 // pred_check_branch
      %2638 = sbr.rel (0) target = $region53
    $region52: #{tpu_custom_call.1} parent=1 // pred_region
      %2639 = dma.done [#allocation5], 1024
    $region53: #{tpu_custom_call.1} parent=1 // pred_fallthru
      _
    // Predicated region
    $region54: #{tpu_custom_call.1} parent=1 // pred_check
      _
    $region55: #{tpu_custom_call.1} parent=1 // pred_check_branch
      %2641 = sbr.rel (0) target = $region57
    $region56: #{tpu_custom_call.1} parent=1 // pred_region
      %2642 = dma.done [#allocation11], 256
    $region57: #{tpu_custom_call.1} parent=1 // pred_fallthru
      _
    %2643 = vsyncpa [#allocation4], 1
    %2644 = vsyncpa [#allocation7], 1
    %2645 = vsyncpa [#allocation5], 1
    %2646 = vsyncpa [#allocation11], 1

</llo_original>
